<compile_context>
chip_gen: v5e
topology: v5e:2x2
jax: 0.10.0
libtpu: 0.0.40
codegen_flags: <defaults>
</compile_context>

<pallas_src>
import functools

import jax
import jax.numpy as jnp
from jax.experimental import pallas as pl
from jax.experimental.pallas import tpu as pltpu


def _round_up(x, m):
    return (x + m - 1) // m * m


def _act(y, act):
    if act == "leaky_relu":
        return jnp.where(y >= 0, y, 0.2 * y)
    if act == "relu":
        return jnp.maximum(y, 0.0)
    if act == "tanh":
        return jnp.tanh(y)
    return y


# --------------------------------------------------------------------------
# Pallas matmul kernel: bf16 inputs, f32 accumulation, bf16 output, optional
# fused epilogue activation and per-column (=per-channel) BatchNorm statistics.
# --------------------------------------------------------------------------
def _mm_kernel(*refs, act, emit_stats, multi_k, tm, m_true, need_mask):
    if multi_k:
        acc_ref = refs[-1]
        refs = refs[:-1]
    if emit_stats:
        a_ref, b_ref, o_ref, sum_ref, ssq_ref = refs
    else:
        a_ref, b_ref, o_ref = refs

    def epilogue(acc):
        if emit_stats:
            s = acc
            if need_mask:
                rows = (jax.lax.broadcasted_iota(jnp.int32, acc.shape, 0)
                        + pl.program_id(0) * tm)
                s = jnp.where(rows < m_true, acc, 0.0)
            sum_ref[...] = jnp.sum(s, axis=0, keepdims=True)
            ssq_ref[...] = jnp.sum(s * s, axis=0, keepdims=True)
        o_ref[...] = _act(acc, act).astype(o_ref.dtype)

    if multi_k:
        @pl.when(pl.program_id(2) == 0)
        def _():
            acc_ref[...] = jnp.zeros_like(acc_ref)

        acc_ref[...] += jnp.dot(a_ref[...], b_ref[...],
                                preferred_element_type=jnp.float32)

        @pl.when(pl.program_id(2) == pl.num_programs(2) - 1)
        def _():
            epilogue(acc_ref[...])
    else:
        epilogue(jnp.dot(a_ref[...], b_ref[...],
                         preferred_element_type=jnp.float32))


def pallas_matmul(a, b, act=None, emit_stats=False, out_dtype=jnp.bfloat16):
    """a (M,K) @ b (K,N) -> (M,N) out_dtype.  bf16 MXU inputs, f32 accumulation.
    If emit_stats, also returns per-column sum and sum-of-squares of the raw
    (pre-activation) f32 GEMM result (for fused BatchNorm statistics)."""
    M, K = a.shape
    K2, N = b.shape
    assert K == K2
    a = a.astype(jnp.bfloat16)
    b = b.astype(jnp.bfloat16)

    if M < 128:
        # Tiny inner-layer GEMMs: launch/tiling overhead dwarfs the FLOPs.
        y = jnp.dot(a, b, preferred_element_type=jnp.float32)
        out = _act(y, act).astype(out_dtype)
        if emit_stats:
            return out, jnp.sum(y, axis=0), jnp.sum(y * y, axis=0)
        return out

    # Adaptive tiles: dims < 128 use full-extent blocks; cheap-K/N layers use a
    # very tall M tile; K <= 2048 runs as a single K step (no acc scratch).
    if K <= 128 and N <= 128 and M >= 2048:
        tm = 2048
    else:
        tm = min(M, 512)
    tn = 512 if N >= 2048 else (256 if N >= 256 else N)
    tk = K if K <= 2048 else 1024

    Mp, Np, Kp = _round_up(M, tm), _round_up(N, tn), _round_up(K, tk)
    if (Mp, Kp) != (M, K):
        a = jnp.pad(a, ((0, Mp - M), (0, Kp - K)))
    if (Kp, Np) != (K, N):
        b = jnp.pad(b, ((0, Kp - K), (0, Np - N)))

    nk = Kp // tk
    multi_k = nk > 1
    need_mask = emit_stats and (Mp != M)

    out_shapes = [jax.ShapeDtypeStruct((Mp, Np), out_dtype)]
    out_specs = [pl.BlockSpec((tm, tn), lambda i, j, k: (i, j))]
    if emit_stats:
        out_shapes += [jax.ShapeDtypeStruct((Mp // tm, Np), jnp.float32),
                       jax.ShapeDtypeStruct((Mp // tm, Np), jnp.float32)]
        out_specs += [pl.BlockSpec((1, tn), lambda i, j, k: (i, j)),
                      pl.BlockSpec((1, tn), lambda i, j, k: (i, j))]

    scratch = [pltpu.VMEM((tm, tn), jnp.float32)] if multi_k else []

    res = pl.pallas_call(
        functools.partial(_mm_kernel, act=act, emit_stats=emit_stats,
                          multi_k=multi_k, tm=tm, m_true=M, need_mask=need_mask),
        out_shape=tuple(out_shapes) if emit_stats else out_shapes[0],
        grid_spec=pltpu.PrefetchScalarGridSpec(
            num_scalar_prefetch=0,
            grid=(Mp // tm, Np // tn, nk),
            in_specs=[pl.BlockSpec((tm, tk), lambda i, j, k: (i, k)),
                      pl.BlockSpec((tk, tn), lambda i, j, k: (k, j))],
            out_specs=out_specs if emit_stats else out_specs[0],
            scratch_shapes=scratch),
        compiler_params=pltpu.CompilerParams(
            dimension_semantics=("parallel", "parallel", "arbitrary")),
    )(a, b)

    if emit_stats:
        out, ps, pss = res
        sums = jnp.sum(ps, axis=0)[:N]
        ssqs = jnp.sum(pss, axis=0)[:N]
        if (Mp, Np) != (M, N):
            out = out[:M, :N]
        return out, sums, ssqs
    out = res
    if (Mp, Np) != (M, N):
        out = out[:M, :N]
    return out


# --------------------------------------------------------------------------
# Dual-operand GEMM: out = relu(affine(a1)) @ b1 + finalize(a2) @ b2.
# Replaces cat([skip, h]) @ W for the transposed convolutions: the concat, the
# skip ReLU/BatchNorm-affine and the child's upnorm-affine+ReLU are fused as
# in-kernel prologues (VPU work hidden under the MXU-bound dots).
# --------------------------------------------------------------------------
def _dual_mm_kernel(*refs, s_aff, h_aff):
    idx = 0
    a1_ref = refs[idx]; idx += 1
    if s_aff:
        s1_ref, t1_ref = refs[idx], refs[idx + 1]; idx += 2
    a2_ref = refs[idx]; idx += 1
    if h_aff:
        s2_ref, t2_ref = refs[idx], refs[idx + 1]; idx += 2
    b1_ref, b2_ref, o_ref = refs[idx], refs[idx + 1], refs[idx + 2]

    a1 = a1_ref[...].astype(jnp.float32)
    if s_aff:
        a1 = a1 * s1_ref[...] + t1_ref[...]
    a1 = jnp.maximum(a1, 0.0).astype(jnp.bfloat16)
    acc = jnp.dot(a1, b1_ref[...], preferred_element_type=jnp.float32)

    a2 = a2_ref[...]
    if h_aff:
        a2 = jnp.maximum(a2.astype(jnp.float32) * s2_ref[...] + t2_ref[...], 0.0)
    a2 = a2.astype(jnp.bfloat16)
    acc = acc + jnp.dot(a2, b2_ref[...], preferred_element_type=jnp.float32)
    o_ref[...] = acc.astype(o_ref.dtype)


def pallas_dual_matmul(a1, s1, t1, a2, s2, t2, b1, b2, out_dtype=jnp.bfloat16):
    """relu(a1*s1+t1) @ b1 + finalize(a2) @ b2 where finalize(a2) =
    relu(a2*s2+t2) if s2 is given, else a2 (already finalized).  s1 None =>
    identity affine on the skip (ReLU only)."""
    M, K1 = a1.shape
    _, K2 = a2.shape
    N = b1.shape[1]
    a1 = a1.astype(jnp.bfloat16)
    a2 = a2.astype(jnp.bfloat16)
    b1 = b1.astype(jnp.bfloat16)
    b2 = b2.astype(jnp.bfloat16)
    s_aff = s1 is not None
    h_aff = s2 is not None

    if M < 128:
        x1 = a1.astype(jnp.float32)
        if s_aff:
            x1 = x1 * s1 + t1
        x1 = jnp.maximum(x1, 0.0).astype(jnp.bfloat16)
        x2 = a2
        if h_aff:
            x2 = jnp.maximum(a2.astype(jnp.float32) * s2 + t2,
                             0.0).astype(jnp.bfloat16)
        y = (jnp.dot(x1, b1, preferred_element_type=jnp.float32)
             + jnp.dot(x2, b2, preferred_element_type=jnp.float32))
        return y.astype(out_dtype)

    if N < 128:
        tm = min(M, 2048)
    elif M >= 8192:
        tm = 1024
    else:
        tm = min(M, 512)
    tn = min(N, 512)

    Mp, Np = _round_up(M, tm), _round_up(N, tn)
    if Mp != M:
        a1 = jnp.pad(a1, ((0, Mp - M), (0, 0)))
        a2 = jnp.pad(a2, ((0, Mp - M), (0, 0)))
    if Np != N:
        b1 = jnp.pad(b1, ((0, 0), (0, Np - N)))
        b2 = jnp.pad(b2, ((0, 0), (0, Np - N)))

    inputs = [a1]
    in_specs = [pl.BlockSpec((tm, K1), lambda i, j: (i, 0))]
    if s_aff:
        inputs += [s1.reshape(1, K1).astype(jnp.float32),
                   t1.reshape(1, K1).astype(jnp.float32)]
        in_specs += [pl.BlockSpec((1, K1), lambda i, j: (0, 0)),
                     pl.BlockSpec((1, K1), lambda i, j: (0, 0))]
    inputs.append(a2)
    in_specs.append(pl.BlockSpec((tm, K2), lambda i, j: (i, 0)))
    if h_aff:
        inputs += [s2.reshape(1, K2).astype(jnp.float32),
                   t2.reshape(1, K2).astype(jnp.float32)]
        in_specs += [pl.BlockSpec((1, K2), lambda i, j: (0, 0)),
                     pl.BlockSpec((1, K2), lambda i, j: (0, 0))]
    inputs += [b1, b2]
    in_specs += [pl.BlockSpec((K1, tn), lambda i, j: (0, j)),
                 pl.BlockSpec((K2, tn), lambda i, j: (0, j))]

    out = pl.pallas_call(
        functools.partial(_dual_mm_kernel, s_aff=s_aff, h_aff=h_aff),
        out_shape=jax.ShapeDtypeStruct((Mp, Np), out_dtype),
        grid_spec=pltpu.PrefetchScalarGridSpec(
            num_scalar_prefetch=0,
            grid=(Mp // tm, Np // tn),
            in_specs=in_specs,
            out_specs=pl.BlockSpec((tm, tn), lambda i, j: (i, j))),
        compiler_params=pltpu.CompilerParams(
            dimension_semantics=("parallel", "parallel")),
    )(*inputs)
    if (Mp, Np) != (M, N):
        out = out[:M, :N]
    return out


# --------------------------------------------------------------------------
# Fused per-channel affine + activation kernel and channel-stats reduction.
# --------------------------------------------------------------------------
def _affine_act_kernel(x_ref, s_ref, t_ref, o_ref, *, act):
    y = x_ref[...].astype(jnp.float32) * s_ref[...] + t_ref[...]
    o_ref[...] = _act(y, act).astype(o_ref.dtype)


def _stats_kernel(x_ref, sum_ref, ssq_ref):
    @pl.when(pl.program_id(0) == 0)
    def _():
        sum_ref[...] = jnp.zeros_like(sum_ref)
        ssq_ref[...] = jnp.zeros_like(ssq_ref)

    x = x_ref[...].astype(jnp.float32)
    sum_ref[...] += jnp.sum(x, axis=0, keepdims=True)
    ssq_ref[...] += jnp.sum(x * x, axis=0, keepdims=True)


def _densify_2d(x):
    """(N,H,W,C) -> (M/f, C*f): lane-dense layout (last dim >= 128) when C < 128."""
    N, H, W, C = x.shape
    M = N * H * W
    f = 1
    if C < 128 and 128 % C == 0 and M % (128 // C) == 0:
        f = 128 // C
    return x.reshape(M // f, C * f), f


def _pick_row_tile(Mp, Cd, itemsize, max_bytes=4 << 20):
    for cand in (4096, 2048, 1024, 512, 256, 128, 64, 32, 16, 8):
        if Mp % cand == 0 and cand * Cd * itemsize <= max_bytes:
            return cand
    return Mp


@functools.partial(jax.jit, static_argnames=("act", "out_dtype"))
def affine_act(x, scale, shift, *, act=None, out_dtype=jnp.bfloat16):
    N, H, W, C = x.shape
    xm, f = _densify_2d(x)
    Md, Cd = xm.shape
    s = jnp.tile(scale.astype(jnp.float32), f).reshape(1, Cd)
    t = jnp.tile(shift.astype(jnp.float32), f).reshape(1, Cd)
    Mp = _round_up(Md, 16)
    if Mp != Md:
        xm = jnp.pad(xm, ((0, Mp - Md), (0, 0)))
    tm = _pick_row_tile(Mp, Cd, xm.dtype.itemsize)
    out = pl.pallas_call(
        functools.partial(_affine_act_kernel, act=act),
        out_shape=jax.ShapeDtypeStruct((Mp, Cd), out_dtype),
        grid_spec=pltpu.PrefetchScalarGridSpec(
            num_scalar_prefetch=0,
            grid=(Mp // tm,),
            in_specs=[pl.BlockSpec((tm, Cd), lambda i: (i, 0)),
                      pl.BlockSpec((1, Cd), lambda i: (0, 0)),
                      pl.BlockSpec((1, Cd), lambda i: (0, 0))],
            out_specs=pl.BlockSpec((tm, Cd), lambda i: (i, 0))),
        compiler_params=pltpu.CompilerParams(
            dimension_semantics=("parallel",)),
    )(xm, s, t)
    if Mp != Md:
        out = out[:Md]
    return out.reshape(N, H, W, C)


@jax.jit
def _channel_stats(x):
    """Single Pallas pass: per-channel sum and sum-of-squares over (N,H,W)."""
    N, H, W, C = x.shape
    xm, f = _densify_2d(x)
    Md, Cd = xm.shape
    Mp = _round_up(Md, 16)
    if Mp != Md:
        xm = jnp.pad(xm, ((0, Mp - Md), (0, 0)))  # zero rows: harmless for sums
    tm = _pick_row_tile(Mp, Cd, xm.dtype.itemsize)
    s, ss = pl.pallas_call(
        _stats_kernel,
        out_shape=(jax.ShapeDtypeStruct((1, Cd), jnp.float32),
                   jax.ShapeDtypeStruct((1, Cd), jnp.float32)),
        grid_spec=pltpu.PrefetchScalarGridSpec(
            num_scalar_prefetch=0,
            grid=(Mp // tm,),
            in_specs=[pl.BlockSpec((tm, Cd), lambda i: (i, 0))],
            out_specs=[pl.BlockSpec((1, Cd), lambda i: (0, 0)),
                       pl.BlockSpec((1, Cd), lambda i: (0, 0))]),
        compiler_params=pltpu.CompilerParams(
            dimension_semantics=("arbitrary",)),
    )(xm)
    return s.reshape(f, C).sum(axis=0), ss.reshape(f, C).sum(axis=0)


def _bn_scale_shift(ssum, ssq, count, gamma, beta, eps=1e-5):
    """Train-mode BatchNorm2d (biased batch stats) as a per-channel affine."""
    mean = ssum / count
    var = jnp.maximum(ssq / count - mean * mean, 0.0)
    scale = gamma * jax.lax.rsqrt(var + eps)
    shift = beta - mean * scale
    return scale, shift


def batchnorm2d_train(x, gamma, beta, *, act=None, eps=1e-5):
    """Train-mode BatchNorm2d + fused activation; bf16 output."""
    N, H, W, C = x.shape
    cnt = float(N * H * W)
    if N * H * W < 256:  # tiny inner layers: pure XLA, no kernel-launch overhead
        x32 = x.astype(jnp.float32)
        mean = jnp.mean(x32, axis=(0, 1, 2))
        var = jnp.maximum(jnp.mean(x32 * x32, axis=(0, 1, 2)) - mean * mean, 0.0)
        scale = gamma * jax.lax.rsqrt(var + eps)
        shift = beta - mean * scale
        return _act(x32 * scale + shift, act).astype(jnp.bfloat16)
    s, ss = _channel_stats(x)
    scale, shift = _bn_scale_shift(s, ss, cnt, gamma, beta, eps)
    return affine_act(x, scale, shift, act=act, out_dtype=jnp.bfloat16)


# --------------------------------------------------------------------------
# Conv layers (im2col / phase-recombination glue in XLA; GEMMs in Pallas)
# --------------------------------------------------------------------------
@functools.partial(jax.jit, static_argnames=("pre_act", "act", "emit_stats"))
def conv2d_down(x, wm, pre_scale=None, pre_shift=None, *,
                pre_act=None, act=None, emit_stats=False):
    """Conv2d(Ci,Co,k=4,s=2,p=1,bias=False) on NHWC x as im2col + Pallas GEMM.
    The pending per-channel affine (parent BatchNorm) and activation on x are
    applied lazily so XLA fuses them into the patch materialization (the
    normalized tensor is never stored on its own, and the conv's zero padding
    is applied after the affine, matching PyTorch).  wm: (16*Ci, Co) bf16,
    row order (kh, kw, ci).  With emit_stats, also returns per-channel sum and
    sum-of-squares of the raw conv output (for this layer's BatchNorm)."""
    N, H, W, Ci = x.shape
    Co = wm.shape[1]
    Ho, Wo = H // 2, W // 2
    xt = x.astype(jnp.float32)
    if pre_scale is not None:
        xt = xt * pre_scale + pre_shift
    xt = _act(xt, pre_act).astype(jnp.bfloat16)
    xp = jnp.pad(xt, ((0, 0), (1, 1), (1, 1), (0, 0)))
    # TODO(synk): the im2col patch tensor is still materialized in HBM (bf16);
    # streaming the 16 taps through the GEMM K axis with manual DMAs would
    # remove this round-trip for the two largest encoder layers.
    cols = [xp[:, kh:kh + 2 * Ho:2, kw:kw + 2 * Wo:2, :]
            for kh in range(4) for kw in range(4)]
    patches = jnp.concatenate(cols, axis=-1).reshape(N * Ho * Wo, 16 * Ci)
    res = pallas_matmul(patches, wm, act=act, emit_stats=emit_stats)
    if emit_stats:
        y, ssum, ssq = res
        return y.reshape(N, Ho, Wo, Co), ssum, ssq
    return res.reshape(N, Ho, Wo, Co)


def _shift_hw(z, dh, dw):
    """result[:, m, n, :] = z[:, m+dh, n+dw, :] with zeros outside bounds."""
    _, H, W, _ = z.shape
    ph = (max(-dh, 0), max(dh, 0))
    pw = (max(-dw, 0), max(dw, 0))
    zp = jnp.pad(z, ((0, 0), ph, pw, (0, 0)))
    return zp[:, ph[0] + dh:ph[0] + dh + H, pw[0] + dw:pw[0] + dw + W, :]


def _phase_recombine(t, N, H, W, co):
    """Taps (N,H,W,4,4,co) -> (N,2H,2W,co): sub-pixel (parity) recombination,
    4 shifted adds per output parity + one depth-to-space reshape (bf16)."""
    def tap(kh, kw):
        return t[:, :, :, kh, kw, :]

    p00 = (tap(1, 1) + _shift_hw(tap(3, 1), -1, 0)
           + _shift_hw(tap(1, 3), 0, -1) + _shift_hw(tap(3, 3), -1, -1))
    p01 = (tap(1, 2) + _shift_hw(tap(3, 2), -1, 0)
           + _shift_hw(tap(1, 0), 0, 1) + _shift_hw(tap(3, 0), -1, 1))
    p10 = (tap(2, 1) + _shift_hw(tap(0, 1), 1, 0)
           + _shift_hw(tap(2, 3), 0, -1) + _shift_hw(tap(0, 3), 1, -1))
    p11 = (tap(2, 2) + _shift_hw(tap(0, 2), 1, 0)
           + _shift_hw(tap(2, 0), 0, 1) + _shift_hw(tap(0, 0), 1, 1))
    row0 = jnp.stack([p00, p01], axis=3)      # (N,H,W,2,Co): col parity
    row1 = jnp.stack([p10, p11], axis=3)
    out = jnp.stack([row0, row1], axis=2)     # (N,H,2,W,2,Co): row parity
    return out.reshape(N, 2 * H, 2 * W, co)


@jax.jit
def conv_transpose2d_up(x, wm):
    """ConvTranspose2d(Ci,Co,k=4,s=2,p=1,bias=False), single operand (innermost).
    wm: (Ci, 16*Co) bf16, column order (kh, kw, co)."""
    N, H, W, Ci = x.shape
    co = wm.shape[1] // 16
    t = pallas_matmul(x.reshape(N * H * W, Ci), wm).reshape(N, H, W, 4, 4, co)
    return _phase_recombine(t, N, H, W, co)


@jax.jit
def conv_transpose2d_up_dual(skip, s_scale, s_shift, h, h_scale, h_shift,
                             wm_s, wm_h):
    """ConvTranspose2d(k=4,s=2,p=1,bias=False) whose input is
    cat([relu(affine(skip)), finalize(h)]): the concat, the skip's
    BatchNorm-affine+ReLU and the child's upnorm-affine+ReLU are all fused
    into the dual-operand Pallas tap-GEMM."""
    N, H, W, _ = skip.shape
    co = wm_s.shape[1] // 16
    M = N * H * W
    t = pallas_dual_matmul(skip.reshape(M, skip.shape[-1]), s_scale, s_shift,
                           h.reshape(M, h.shape[-1]), h_scale, h_shift,
                           wm_s, wm_h)
    t = t.reshape(N, H, W, 4, 4, co)
    return _phase_recombine(t, N, H, W, co)


# --------------------------------------------------------------------------
# Unet parameters (init_model semantics: conv ~ N(0, 0.02), bias 0,
# BN gamma ~ N(1, 0.02), beta 0).  Weight reshape/bf16 cast hoisted to init.
# --------------------------------------------------------------------------
def _init_conv(key, shape):
    return 0.02 * jax.random.normal(key, shape, jnp.float32)


def _down_wm(w):   # (Co, Ci, 4, 4) -> (16*Ci, Co), row order (kh, kw, ci)
    return jnp.transpose(w, (2, 3, 1, 0)).reshape(-1, w.shape[0]).astype(jnp.bfloat16)


def _up_wm(w):     # (Ci, Co, 4, 4) -> (Ci, 16*Co), column order (kh, kw, co)
    return jnp.transpose(w, (0, 2, 3, 1)).reshape(w.shape[0], -1).astype(jnp.bfloat16)


def make_unet_block(key, nf, ni, input_c=None, submodule=None,
                    innermost=False, outermost=False, dropout=False):
    if input_c is None:
        input_c = nf
    k = jax.random.split(key, 6)
    p = dict(innermost=innermost, outermost=outermost, dropout=dropout,
             submodule=submodule, up_co=nf)
    p["down_wm"] = _down_wm(_init_conv(k[0], (ni, input_c, 4, 4)))
    if outermost:
        wm = _up_wm(_init_conv(k[1], (ni * 2, nf, 4, 4)))
        p["up_wm_s"], p["up_wm_h"] = wm[:ni], wm[ni:]     # cat([skip, h]) row split
        p["upconv_b"] = jnp.zeros((nf,), jnp.float32)
    elif innermost:
        p["up_wm"] = _up_wm(_init_conv(k[1], (ni, nf, 4, 4)))
        p["upnorm_g"] = 1.0 + 0.02 * jax.random.normal(k[2], (nf,), jnp.float32)
        p["upnorm_b"] = jnp.zeros((nf,), jnp.float32)
    else:
        p["downnorm_g"] = 1.0 + 0.02 * jax.random.normal(k[3], (ni,), jnp.float32)
        p["downnorm_b"] = jnp.zeros((ni,), jnp.float32)
        wm = _up_wm(_init_conv(k[1], (ni * 2, nf, 4, 4)))
        p["up_wm_s"], p["up_wm_h"] = wm[:ni], wm[ni:]
        p["upnorm_g"] = 1.0 + 0.02 * jax.random.normal(k[2], (nf,), jnp.float32)
        p["upnorm_b"] = jnp.zeros((nf,), jnp.float32)
        if dropout:
            p["dropout_key"] = k[5]
    # TODO(synk): non-outermost ConvTranspose2d biases are omitted (zero at
    # init; would matter only for arbitrary loaded weights).
    return p


def make_unet_params(key, input_c=1, output_c=2, n_down=8, num_filters=64):
    keys = iter(jax.random.split(key, n_down + 1))
    block = make_unet_block(next(keys), num_filters * 8, num_filters * 8,
                            innermost=True)
    for _ in range(n_down - 5):
        block = make_unet_block(next(keys), num_filters * 8, num_filters * 8,
                                submodule=block, dropout=True)
    out_filters = num_filters * 8
    for _ in range(3):
        block = make_unet_block(next(keys), out_filters // 2, out_filters,
                                submodule=block)
        out_filters //= 2
    return make_unet_block(next(keys), output_c, out_filters,
                           input_c=input_c, submodule=block, outermost=True)


# --------------------------------------------------------------------------
# Unet forward.  Cross-block fusion convention:
#  * a block receives the RAW tensor feeding its down path plus the parent's
#    pending BatchNorm affine (None = identity); the block's own LeakyReLU(0.2)
#    and that affine are fused into the im2col / GEMM prologues;
#  * a non-outermost block returns (u, scale, shift): the value the parent's
#    upconv consumes is relu(u*scale + shift) if scale is not None (upnorm +
#    parent uprelu fused into the parent's dual GEMM), else u is already final
#    (dropout blocks: ReLU commutes with the {0,2} dropout mask).
# Semantics are unchanged: relu(leaky(x)) == relu(x) and the concat halves are
# just consumed separately by the dual-operand tap-GEMM.
# --------------------------------------------------------------------------
def unet_block_forward(p, x, pre_scale=None, pre_shift=None):
    if p["outermost"]:
        h = conv2d_down(x, p["down_wm"])                       # raw downconv output
        cu, cs, ct = unet_block_forward(p["submodule"], h, None, None)
        u = conv_transpose2d_up_dual(h, None, None, cu, cs, ct,
                                     p["up_wm_s"], p["up_wm_h"])
        ones = jnp.ones((p["up_co"],), jnp.float32)
        # ConvTranspose bias + Tanh in one lane-dense pass; f32 model output.
        # TODO(synk): the final NHWC->NCHW transpose stays a separate XLA pass.
        return affine_act(u, ones, p["upconv_b"], act="tanh",
                          out_dtype=jnp.float32)

    if p["innermost"]:
        h = conv2d_down(x, p["down_wm"], pre_scale, pre_shift,
                        pre_act="leaky_relu", act="relu")      # + own uprelu
        u = conv_transpose2d_up(h, p["up_wm"])
        u = batchnorm2d_train(u, p["upnorm_g"], p["upnorm_b"], act="relu")
        return u, None, None

    # middle block: downconv emits its BatchNorm statistics from the GEMM epilogue
    h, dsum, dssq = conv2d_down(x, p["down_wm"], pre_scale, pre_shift,
                                pre_act="leaky_relu", emit_stats=True)
    cnt = float(h.shape[0] * h.shape[1] * h.shape[2])
    d_scale, d_shift = _bn_scale_shift(dsum, dssq, cnt,
                                       p["downnorm_g"], p["downnorm_b"])
    cu, cs, ct = unet_block_forward(p["submodule"], h, d_scale, d_shift)
    # upconv input = cat([downnorm(h), child_up]) with the ReLU applied --
    # both halves produced inside the dual GEMM prologues (no concat tensor).
    u = conv_transpose2d_up_dual(h, d_scale, d_shift, cu, cs, ct,
                                 p["up_wm_s"], p["up_wm_h"])
    if p["dropout"]:
        u = batchnorm2d_train(u, p["upnorm_g"], p["upnorm_b"], act="relu")
        # train-mode nn.Dropout(0.5); ReLU commutes with the {0,2} mask.
        # TODO(synk): key is fixed per layer, so the mask repeats across forwards.
        keep = jax.random.bernoulli(p["dropout_key"], 0.5, u.shape)
        return jnp.where(keep, u * 2.0, 0.0), None, None
    # no dropout: stats-only pass here; the upnorm affine + parent ReLU are
    # fused into the parent's dual up-GEMM prologue.
    usum, ussq = _channel_stats(u)
    ucnt = float(u.shape[0] * u.shape[1] * u.shape[2])
    u_scale, u_shift = _bn_scale_shift(usum, ussq, ucnt,
                                       p["upnorm_g"], p["upnorm_b"])
    return u, u_scale, u_shift


def main_model_forward(params, L_nchw):
    """MainModel.forward(): fake_color = net_G(L).  L is NCHW (N,1,H,W)."""
    x = jnp.transpose(L_nchw, (0, 2, 3, 1)).astype(jnp.float32)  # NCHW -> NHWC
    y = unet_block_forward(params, x)
    return jnp.transpose(y, (0, 3, 1, 2))                        # NHWC -> NCHW


# --------------------------------------------------------------------------
if __name__ == "__main__":
    key = jax.random.PRNGKey(0)
    pkey, xkey = jax.random.split(key)

    params = make_unet_params(pkey)   # Unet(input_c=1, output_c=2, n_down=8, num_filters=64)

    # n_down=8 forces spatial >= 2**8 = 256; batch kept small (2).
    L = jax.random.normal(xkey, (2, 1, 256, 256), jnp.float32)

    fake_color = main_model_forward(params, L)
    fake_color = jax.block_until_ready(fake_color)

    assert fake_color.shape == (2, 2, 256, 256)
    assert bool(jnp.all(jnp.isfinite(fake_color)))
    assert bool(jnp.all(jnp.abs(fake_color) <= 1.0))  # Tanh output range
    print("KERNEL_OK")
</pallas_src>

<mosaic_0001>
module attributes {stable_mosaic.version = 11 : i64} {
  func.func @_mm_kernel(%arg0: i32, %arg1: i32, %arg2: i32, %arg3: memref<2048x16xbf16, #tpu.memory_space<vmem>>, %arg4: memref<16x64xbf16, #tpu.memory_space<vmem>>, %arg5: memref<2048x64xbf16, #tpu.memory_space<vmem>>) attributes {dimension_semantics = [#tpu.dimension_semantics<parallel>, #tpu.dimension_semantics<parallel>, #tpu.dimension_semantics<arbitrary>], iteration_bounds = array<i64: 16, 1, 1>, scalar_prefetch = 0 : i64, scratch_operands = 0 : i64, tpu.core_type = #tpu.core_type<tc>, window_params = [{transform_indices = @transform_0, window_bounds = array<i64: 2048, 16>}, {transform_indices = @transform_1, window_bounds = array<i64: 16, 64>}, {transform_indices = @transform_2, window_bounds = array<i64: 2048, 64>}]} {
    %c0 = arith.constant 0 : index
    %c0_0 = arith.constant 0 : index
    %0 = vector.load %arg3[%c0, %c0_0] : memref<2048x16xbf16, #tpu.memory_space<vmem>>, vector<2048x16xbf16>
    %c0_1 = arith.constant 0 : index
    %c0_2 = arith.constant 0 : index
    %1 = vector.load %arg4[%c0_1, %c0_2] : memref<16x64xbf16, #tpu.memory_space<vmem>>, vector<16x64xbf16>
    %cst = arith.constant dense<0.000000e+00> : vector<2048x64xf32>
    %2 = tpu.matmul %0, %1, %cst {dimension_numbers = #tpu.dot_dimension_numbers<[1], [0], [0], [1], [0, 0, 1, 1], [], []>} : vector<2048x16xbf16>, vector<16x64xbf16>, vector<2048x64xf32> -> vector<2048x64xf32>
    %3 = arith.truncf %2 : vector<2048x64xf32> to vector<2048x64xbf16>
    %c0_3 = arith.constant 0 : index
    %c0_4 = arith.constant 0 : index
    %4 = vector.load %arg5[%c0_3, %c0_4] : memref<2048x64xbf16, #tpu.memory_space<vmem>>, vector<2048x64xbf16>
    tpu.vector_store %arg5[%c0_3, %c0_4], %3 {strides = array<i32>} : memref<2048x64xbf16, #tpu.memory_space<vmem>>, vector<2048x64xbf16>,
    return
  }
  func.func @transform_0(%arg0: i32, %arg1: i32, %arg2: i32) -> (i32, i32) {
    %c0_i32 = arith.constant 0 : i32
    return %arg0, %arg2 : i32, i32
  }
  func.func @transform_1(%arg0: i32, %arg1: i32, %arg2: i32) -> (i32, i32) {
    %c0_i32 = arith.constant 0 : i32
    return %arg2, %arg1 : i32, i32
  }
  func.func @transform_2(%arg0: i32, %arg1: i32, %arg2: i32) -> (i32, i32) {
    %c0_i32 = arith.constant 0 : i32
    return %arg0, %arg1 : i32, i32
  }
}

</mosaic_0001>

<llo_original>
// kernel: conv2d_down.1
$region0: #{conv2d_down.1}
  #allocation0 [shape = 'u32[]', space=smem, size = 0x4, offset = 0x4, fixed_abs, tag = 'smem constant byte address 0x4 - core index']
  #allocation1 [shape = 'u32[72,128]{1,0:T(1,128)}', space=vmem, size = 0x9000, scoped, tag = 'internal scratch']
  %s0 = inlined_call_operand.vmem [shape: bf16[32768,16], index: 0, kind: input, shape index: {}]
  %s1 = inlined_call_operand.vmem [shape: bf16[16,64], index: 1, kind: input, shape index: {}]
  %s2 = inlined_call_operand.vmem [shape: bf16[32768,64], index: 2, kind: output, shape index: {}]
  %s3 = sld [smem:[#allocation0]]
  $region41: #{conv2d_down.1} parent=0
    _
  %s5 = ssub.s32 1, %s3
  %s6 = scalar_select 0, %s5, %s3
  loop: start=0, step=1, limit=18
  $region2: #{conv2d_down.1} parent=0 // loop_pre_header
    _
  $region3: #{conv2d_down.1} parent=0 // loop_header
    %s8 = sphi 0, %s12
    %p9 = scmp.ge.s32.totalorder %s8, 18
    %s15 = sphi 0, %s34
    %s16 = sphi 0, %s30
    %s17 = sphi 0, %s26
    %s18 = sphi 0, %s15
    %s19 = sphi 0, %s16
    %s20 = sphi 0, %s17
    %s21 = sphi 0, %s18
    %s22 = sphi 0, %s19
    %s23 = sphi 0, %s20
    %s39 = sphi 0, %s41
    %s42 = sphi 0, %s39
    %s43 = sphi 0, %s42
    %s59 = sphi 0, %s43
    %s67 = sphi 0, %s69
    %s70 = sphi 0, %s67
    %s71 = sphi 0, %s70
    %s87 = sphi 0, %s71
    %s95 = sphi 0, %s97
    %s98 = sphi 0, %s95
    %s99 = sphi 0, %s98
    %s115 = sphi 0, %s99
  $region4: #{conv2d_down.1} parent=0 // loop_header_branch
    %11 = sbr.rel (%p9) target = $region8
  $region5: #{conv2d_down.1} parent=0 // loop_body
    %s13 = ssub.s32 %s8, 1
    %s14 = ssub.s32 %s8, 2
    %s24 = sadd.s32 1, %s17
    %p25 = scmp.ge.s32.totalorder %s24, 1
    %s26 = scalar_select %p25, 0, %s24
    %s27 = sadd.s32 1, %s16
    %s28 = scalar_select %p25, %s27, %s16
    %p29 = scmp.ge.s32.totalorder %s28, 1
    %s30 = scalar_select %p29, 0, %s28
    %s31 = sadd.s32 1, %s15
    %s32 = scalar_select %p29, %s31, %s15
    %p33 = scmp.ge.s32.totalorder %s32, 16
    %s34 = scalar_select %p33, 0, %s32
    %s35 = ssub.s32 %s15, %s34
    %s36 = ssub.s32 %s17, %s26
    %s37 = sor.u32 %s35, %s36
    %p38 = scmp.eq.s32.totalorder %s37, 0
    %s40 = sadd.s32 %s39, 1
    %s41 = scalar_select %p38, %s39, %s40
    %p44 = pneg %p38
    %p45 = scmp.eq.s32.totalorder %s8, 15
    %p46 = por %p44, %p45
    %p47 = scmp.ne.s32.totalorder %s39, %s42
    %p48 = scmp.eq.s32.totalorder %s8, 0
    %p49 = por %p47, %p48
    %p50 = scmp.ne.s32.totalorder %s39, %s42
    %p51 = scmp.eq.s32.totalorder %s13, 15
    %p52 = por %p50, %p51
    %p53 = scmp.ne.s32.totalorder %s42, %s43
    %p54 = scmp.eq.s32.totalorder %s13, 0
    %p55 = por %p53, %p54
    %p56 = scmp.ne.s32.totalorder %s42, %s43
    %p57 = scmp.eq.s32.totalorder %s14, 15
    %p58 = por %p56, %p57
    %p60 = scmp.ne.s32.totalorder %s43, %s59
    %p61 = scmp.eq.s32.totalorder %s14, 0
    %p62 = por %p60, %p61
    %s63 = ssub.s32 %s17, %s26
    %s64 = ssub.s32 %s16, %s30
    %s65 = sor.u32 %s63, %s64
    %p66 = scmp.eq.s32.totalorder %s65, 0
    %s68 = sadd.s32 %s67, 1
    %s69 = scalar_select %p66, %s67, %s68
    %p72 = pneg %p66
    %p73 = scmp.eq.s32.totalorder %s8, 15
    %p74 = por %p72, %p73
    %p75 = scmp.ne.s32.totalorder %s67, %s70
    %p76 = scmp.eq.s32.totalorder %s8, 0
    %p77 = por %p75, %p76
    %p78 = scmp.ne.s32.totalorder %s67, %s70
    %p79 = scmp.eq.s32.totalorder %s13, 15
    %p80 = por %p78, %p79
    %p81 = scmp.ne.s32.totalorder %s70, %s71
    %p82 = scmp.eq.s32.totalorder %s13, 0
    %p83 = por %p81, %p82
    %p84 = scmp.ne.s32.totalorder %s70, %s71
    %p85 = scmp.eq.s32.totalorder %s14, 15
    %p86 = por %p84, %p85
    %p88 = scmp.ne.s32.totalorder %s71, %s87
    %p89 = scmp.eq.s32.totalorder %s14, 0
    %p90 = por %p88, %p89
    %s91 = ssub.s32 %s15, %s34
    %s92 = ssub.s32 %s16, %s30
    %s93 = sor.u32 %s91, %s92
    %p94 = scmp.eq.s32.totalorder %s93, 0
    %s96 = sadd.s32 %s95, 1
    %s97 = scalar_select %p94, %s95, %s96
    %p100 = pneg %p94
    %p101 = scmp.eq.s32.totalorder %s8, 15
    %p102 = por %p100, %p101
    %p103 = scmp.ne.s32.totalorder %s95, %s98
    %p104 = scmp.eq.s32.totalorder %s8, 0
    %p105 = por %p103, %p104
    %p106 = scmp.ne.s32.totalorder %s95, %s98
    %p107 = scmp.eq.s32.totalorder %s13, 15
    %p108 = por %p106, %p107
    %p109 = scmp.ne.s32.totalorder %s98, %s99
    %p110 = scmp.eq.s32.totalorder %s13, 0
    %p111 = por %p109, %p110
    %p112 = scmp.ne.s32.totalorder %s98, %s99
    %p113 = scmp.eq.s32.totalorder %s14, 15
    %p114 = por %p112, %p113
    %p116 = scmp.ne.s32.totalorder %s99, %s115
    %p117 = scmp.eq.s32.totalorder %s14, 0
    %p118 = por %p116, %p117
    %p119 = scmp.le.s32.totalorder 1, %s8
    %p120 = scmp.lt.s32.totalorder %s8, 17
    %p121 = pnand %p119, %p120
    %p122 = pneg %p121
    // Predicated region
    $region9: #{conv2d_down.1} parent=5 // pred_check
      _
    $region10: #{conv2d_down.1} parent=5 // pred_check_branch
      %124 = sbr.rel (%p121) target = $region12
    $region11: #{conv2d_down.1} parent=5 // pred_region
      %s125 = ssub.s32 %s8, 1
      // Predicated region
      $region13: #{conv2d_down.1} parent=11 // pred_check
        %p126 = pneg %p83
      $region14: #{conv2d_down.1} parent=11 // pred_check_branch
        %128 = sbr.rel (%p126) target = $region16
      $region15: #{conv2d_down.1} parent=11 // pred_region
        %s129 = smul.u32 2, %s20
        %p130 = scmp.lt.s32.totalorder %s129, 1
        %s131 = scalar_select %p130, %s129, 1
        %p132 = scmp.lt.s32.totalorder %s19, 0
        %s133 = scalar_select %p132, %s19, 0
        %s134 = sadd.s32 %s133, %s131
        %s135 = smul.addr %s134, 4
        %s136 = scalar_lea.vmem %s1, %s135
        %s137 = smul.u32 2, %s20
      $region16: #{conv2d_down.1} parent=11 // pred_fallthru
        _
    $region12: #{conv2d_down.1} parent=5 // pred_fallthru
      _
    %p138 = scmp.lt.s32.totalorder %s8, 16
    // Predicated region
    $region17: #{conv2d_down.1} parent=5 // pred_check
      %p139 = pneg %p138
    $region18: #{conv2d_down.1} parent=5 // pred_check_branch
      %141 = sbr.rel (%p139) target = $region20
    $region19: #{conv2d_down.1} parent=5 // pred_region
      // Predicated region
      $region21: #{conv2d_down.1} parent=19 // pred_check
        %p142 = pneg %p49
      $region22: #{conv2d_down.1} parent=19 // pred_check_branch
        %144 = sbr.rel (%p142) target = $region24
      $region23: #{conv2d_down.1} parent=19 // pred_region
        %s145 = smul.u32 256, %s15
        %p146 = scmp.lt.s32.totalorder %s145, 4095
        %s147 = scalar_select %p146, %s145, 4095
        %p148 = scmp.lt.s32.totalorder %s17, 0
        %s149 = scalar_select %p148, %s17, 0
        %s150 = sadd.s32 %s149, %s147
        %s151 = smul.addr %s150, 4
        %s152 = scalar_lea.vmem %s0, %s151
        %s153 = smul.u32 256, %s15
      $region24: #{conv2d_down.1} parent=19 // pred_fallthru
        _
    $region20: #{conv2d_down.1} parent=5 // pred_fallthru
      _
    %p154 = scmp.le.s32.totalorder 1, %s8
    %p155 = scmp.lt.s32.totalorder %s8, 17
    %p156 = pnand %p154, %p155
    %p157 = pneg %p156
    // Predicated region
    $region25: #{conv2d_down.1} parent=5 // pred_check
      _
    $region26: #{conv2d_down.1} parent=5 // pred_check_branch
      %159 = sbr.rel (%p156) target = $region28
    $region27: #{conv2d_down.1} parent=5 // pred_region
      %s160 = ssub.s32 %s8, 1
      %s161 = smul.u32 256, %s18
      %p162 = scmp.lt.s32.totalorder %s161, 4095
      %s163 = scalar_select %p162, %s161, 4095
      %p164 = scmp.lt.s32.totalorder %s20, 0
      %s165 = scalar_select %p164, %s20, 0
      %s166 = sadd.s32 %s165, %s163
      %s167 = smul.addr %s166, 4
      %s168 = scalar_lea.vmem %s0, %s167
      %p169 = pneg %p55
      %p170 = pneg %p52
      %s171 = smul.u32 2, %s20
      %p172 = scmp.lt.s32.totalorder %s171, 1
      %s173 = scalar_select %p172, %s171, 1
      %p174 = scmp.lt.s32.totalorder %s19, 0
      %s175 = scalar_select %p174, %s19, 0
      %s176 = sadd.s32 %s175, %s173
      %s177 = smul.addr %s176, 4
      %s178 = scalar_lea.vmem %s1, %s177
      %p179 = pneg %p83
      %p180 = pneg %p80
      %p181 = pneg %p111
      %p182 = pneg %p108
      %s183 = smul.u32 256, %s18
      %p184 = scmp.lt.s32.totalorder %s183, 4095
      %s185 = scalar_select %p184, %s183, 4095
      %p186 = scmp.lt.s32.totalorder %s19, 0
      %s187 = scalar_select %p186, %s19, 0
      %s188 = sadd.s32 %s187, %s185
      %s189 = smul.addr %s188, 4
      %s190 = scalar_lea.vmem %s2, %s189
      %s191 = smul.u32 256, %s18
      %p192 = scmp.lt.s32.totalorder %s191, 4095
      %s193 = scalar_select %p192, %s191, 4095
      %p194 = scmp.lt.s32.totalorder %s20, 0
      %s195 = scalar_select %p194, %s20, 0
      %s196 = sadd.s32 %s195, %s193
      %s197 = smul.addr %s196, 4
      %s198 = scalar_lea.vmem %s0, %s197
      %s199 = smul.u32 256, %s18
      %s200 = smul.u32 2, %s20
      %p201 = scmp.lt.s32.totalorder %s200, 1
      %s202 = scalar_select %p201, %s200, 1
      %p203 = scmp.lt.s32.totalorder %s19, 0
      %s204 = scalar_select %p203, %s19, 0
      %s205 = sadd.s32 %s204, %s202
      %s206 = smul.addr %s205, 4
      %s207 = scalar_lea.vmem %s1, %s206
      %s208 = smul.u32 2, %s20
      %s209 = smul.u32 256, %s18
      %p210 = scmp.lt.s32.totalorder %s209, 4095
      %s211 = scalar_select %p210, %s209, 4095
      %p212 = scmp.lt.s32.totalorder %s19, 0
      %s213 = scalar_select %p212, %s19, 0
      %s214 = sadd.s32 %s213, %s211
      %s215 = smul.addr %s214, 4
      %s216 = scalar_lea.vmem %s2, %s215
      %s217 = smul.u32 256, %s18
      %v219 = vld [vmem:[%s198] sm:$0xf]
      %v220 = vld [vmem:[%s198 + $0x4] sm:$0xf]
      %v221 = vld [vmem:[%s198 + $0x8] sm:$0xf]
      %v222 = vld [vmem:[%s198 + $0xc] sm:$0xf]
      %v223 = vld [vmem:[%s198 + $0x10] sm:$0xf]
      %v224 = vld [vmem:[%s198 + $0x14] sm:$0xf]
      %v225 = vld [vmem:[%s198 + $0x18] sm:$0xf]
      %v226 = vld [vmem:[%s198 + $0x1c] sm:$0xf]
      %v227 = vld [vmem:[%s198 + $0x20] sm:$0xf]
      %v228 = vld [vmem:[%s198 + $0x24] sm:$0xf]
      %v229 = vld [vmem:[%s198 + $0x28] sm:$0xf]
      %v230 = vld [vmem:[%s198 + $0x2c] sm:$0xf]
      %v231 = vld [vmem:[%s198 + $0x30] sm:$0xf]
      %v232 = vld [vmem:[%s198 + $0x34] sm:$0xf]
      %v233 = vld [vmem:[%s198 + $0x38] sm:$0xf]
      %v234 = vld [vmem:[%s198 + $0x3c] sm:$0xf]
      %v235 = vld [vmem:[%s198 + $0x40] sm:$0xf]
      %v236 = vld [vmem:[%s198 + $0x44] sm:$0xf]
      %v237 = vld [vmem:[%s198 + $0x48] sm:$0xf]
      %v238 = vld [vmem:[%s198 + $0x4c] sm:$0xf]
      %v239 = vld [vmem:[%s198 + $0x50] sm:$0xf]
      %v240 = vld [vmem:[%s198 + $0x54] sm:$0xf]
      %v241 = vld [vmem:[%s198 + $0x58] sm:$0xf]
      %v242 = vld [vmem:[%s198 + $0x5c] sm:$0xf]
      %v243 = vld [vmem:[%s198 + $0x60] sm:$0xf]
      %v244 = vld [vmem:[%s198 + $0x64] sm:$0xf]
      %v245 = vld [vmem:[%s198 + $0x68] sm:$0xf]
      %v246 = vld [vmem:[%s198 + $0x6c] sm:$0xf]
      %v247 = vld [vmem:[%s198 + $0x70] sm:$0xf]
      %v248 = vld [vmem:[%s198 + $0x74] sm:$0xf]
      %v249 = vld [vmem:[%s198 + $0x78] sm:$0xf]
      %v250 = vld [vmem:[%s198 + $0x7c] sm:$0xf]
      %v251 = vld [vmem:[%s198 + $0x80] sm:$0xf]
      %v252 = vld [vmem:[%s198 + $0x84] sm:$0xf]
      %v253 = vld [vmem:[%s198 + $0x88] sm:$0xf]
      %v254 = vld [vmem:[%s198 + $0x8c] sm:$0xf]
      %v255 = vld [vmem:[%s198 + $0x90] sm:$0xf]
      %v256 = vld [vmem:[%s198 + $0x94] sm:$0xf]
      %v257 = vld [vmem:[%s198 + $0x98] sm:$0xf]
      %v258 = vld [vmem:[%s198 + $0x9c] sm:$0xf]
      %v259 = vld [vmem:[%s198 + $0xa0] sm:$0xf]
      %v260 = vld [vmem:[%s198 + $0xa4] sm:$0xf]
      %v261 = vld [vmem:[%s198 + $0xa8] sm:$0xf]
      %v262 = vld [vmem:[%s198 + $0xac] sm:$0xf]
      %v263 = vld [vmem:[%s198 + $0xb0] sm:$0xf]
      %v264 = vld [vmem:[%s198 + $0xb4] sm:$0xf]
      %v265 = vld [vmem:[%s198 + $0xb8] sm:$0xf]
      %v266 = vld [vmem:[%s198 + $0xbc] sm:$0xf]
      %v267 = vld [vmem:[%s198 + $0xc0] sm:$0xf]
      %v268 = vld [vmem:[%s198 + $0xc4] sm:$0xf]
      %v269 = vld [vmem:[%s198 + $0xc8] sm:$0xf]
      %v270 = vld [vmem:[%s198 + $0xcc] sm:$0xf]
      %v271 = vld [vmem:[%s198 + $0xd0] sm:$0xf]
      %v272 = vld [vmem:[%s198 + $0xd4] sm:$0xf]
      %v273 = vld [vmem:[%s198 + $0xd8] sm:$0xf]
      %v274 = vld [vmem:[%s198 + $0xdc] sm:$0xf]
      %v275 = vld [vmem:[%s198 + $0xe0] sm:$0xf]
      %v276 = vld [vmem:[%s198 + $0xe4] sm:$0xf]
      %v277 = vld [vmem:[%s198 + $0xe8] sm:$0xf]
      %v278 = vld [vmem:[%s198 + $0xec] sm:$0xf]
      %v279 = vld [vmem:[%s198 + $0xf0] sm:$0xf]
      %v280 = vld [vmem:[%s198 + $0xf4] sm:$0xf]
      %v281 = vld [vmem:[%s198 + $0xf8] sm:$0xf]
      %v282 = vld [vmem:[%s198 + $0xfc] sm:$0xf]
      %v283 = vld [vmem:[%s198 + $0x100] sm:$0xf]
      %v284 = vld [vmem:[%s198 + $0x104] sm:$0xf]
      %v285 = vld [vmem:[%s198 + $0x108] sm:$0xf]
      %v286 = vld [vmem:[%s198 + $0x10c] sm:$0xf]
      %v287 = vld [vmem:[%s198 + $0x110] sm:$0xf]
      %v288 = vld [vmem:[%s198 + $0x114] sm:$0xf]
      %v289 = vld [vmem:[%s198 + $0x118] sm:$0xf]
      %v290 = vld [vmem:[%s198 + $0x11c] sm:$0xf]
      %v291 = vld [vmem:[%s198 + $0x120] sm:$0xf]
      %v292 = vld [vmem:[%s198 + $0x124] sm:$0xf]
      %v293 = vld [vmem:[%s198 + $0x128] sm:$0xf]
      %v294 = vld [vmem:[%s198 + $0x12c] sm:$0xf]
      %v295 = vld [vmem:[%s198 + $0x130] sm:$0xf]
      %v296 = vld [vmem:[%s198 + $0x134] sm:$0xf]
      %v297 = vld [vmem:[%s198 + $0x138] sm:$0xf]
      %v298 = vld [vmem:[%s198 + $0x13c] sm:$0xf]
      %v299 = vld [vmem:[%s198 + $0x140] sm:$0xf]
      %v300 = vld [vmem:[%s198 + $0x144] sm:$0xf]
      %v301 = vld [vmem:[%s198 + $0x148] sm:$0xf]
      %v302 = vld [vmem:[%s198 + $0x14c] sm:$0xf]
      %v303 = vld [vmem:[%s198 + $0x150] sm:$0xf]
      %v304 = vld [vmem:[%s198 + $0x154] sm:$0xf]
      %v305 = vld [vmem:[%s198 + $0x158] sm:$0xf]
      %v306 = vld [vmem:[%s198 + $0x15c] sm:$0xf]
      %v307 = vld [vmem:[%s198 + $0x160] sm:$0xf]
      %v308 = vld [vmem:[%s198 + $0x164] sm:$0xf]
      %v309 = vld [vmem:[%s198 + $0x168] sm:$0xf]
      %v310 = vld [vmem:[%s198 + $0x16c] sm:$0xf]
      %v311 = vld [vmem:[%s198 + $0x170] sm:$0xf]
      %v312 = vld [vmem:[%s198 + $0x174] sm:$0xf]
      %v313 = vld [vmem:[%s198 + $0x178] sm:$0xf]
      %v314 = vld [vmem:[%s198 + $0x17c] sm:$0xf]
      %v315 = vld [vmem:[%s198 + $0x180] sm:$0xf]
      %v316 = vld [vmem:[%s198 + $0x184] sm:$0xf]
      %v317 = vld [vmem:[%s198 + $0x188] sm:$0xf]
      %v318 = vld [vmem:[%s198 + $0x18c] sm:$0xf]
      %v319 = vld [vmem:[%s198 + $0x190] sm:$0xf]
      %v320 = vld [vmem:[%s198 + $0x194] sm:$0xf]
      %v321 = vld [vmem:[%s198 + $0x198] sm:$0xf]
      %v322 = vld [vmem:[%s198 + $0x19c] sm:$0xf]
      %v323 = vld [vmem:[%s198 + $0x1a0] sm:$0xf]
      %v324 = vld [vmem:[%s198 + $0x1a4] sm:$0xf]
      %v325 = vld [vmem:[%s198 + $0x1a8] sm:$0xf]
      %v326 = vld [vmem:[%s198 + $0x1ac] sm:$0xf]
      %v327 = vld [vmem:[%s198 + $0x1b0] sm:$0xf]
      %v328 = vld [vmem:[%s198 + $0x1b4] sm:$0xf]
      %v329 = vld [vmem:[%s198 + $0x1b8] sm:$0xf]
      %v330 = vld [vmem:[%s198 + $0x1bc] sm:$0xf]
      %v331 = vld [vmem:[%s198 + $0x1c0] sm:$0xf]
      %v332 = vld [vmem:[%s198 + $0x1c4] sm:$0xf]
      %v333 = vld [vmem:[%s198 + $0x1c8] sm:$0xf]
      %v334 = vld [vmem:[%s198 + $0x1cc] sm:$0xf]
      %v335 = vld [vmem:[%s198 + $0x1d0] sm:$0xf]
      %v336 = vld [vmem:[%s198 + $0x1d4] sm:$0xf]
      %v337 = vld [vmem:[%s198 + $0x1d8] sm:$0xf]
      %v338 = vld [vmem:[%s198 + $0x1dc] sm:$0xf]
      %v339 = vld [vmem:[%s198 + $0x1e0] sm:$0xf]
      %v340 = vld [vmem:[%s198 + $0x1e4] sm:$0xf]
      %v341 = vld [vmem:[%s198 + $0x1e8] sm:$0xf]
      %v342 = vld [vmem:[%s198 + $0x1ec] sm:$0xf]
      %v343 = vld [vmem:[%s198 + $0x1f0] sm:$0xf]
      %v344 = vld [vmem:[%s198 + $0x1f4] sm:$0xf]
      %v345 = vld [vmem:[%s198 + $0x1f8] sm:$0xf]
      %v346 = vld [vmem:[%s198 + $0x1fc] sm:$0xf]
      %v347 = vld [vmem:[%s198 + $0x200] sm:$0xf]
      %v348 = vld [vmem:[%s198 + $0x204] sm:$0xf]
      %v349 = vld [vmem:[%s198 + $0x208] sm:$0xf]
      %v350 = vld [vmem:[%s198 + $0x20c] sm:$0xf]
      %v351 = vld [vmem:[%s198 + $0x210] sm:$0xf]
      %v352 = vld [vmem:[%s198 + $0x214] sm:$0xf]
      %v353 = vld [vmem:[%s198 + $0x218] sm:$0xf]
      %v354 = vld [vmem:[%s198 + $0x21c] sm:$0xf]
      %v355 = vld [vmem:[%s198 + $0x220] sm:$0xf]
      %v356 = vld [vmem:[%s198 + $0x224] sm:$0xf]
      %v357 = vld [vmem:[%s198 + $0x228] sm:$0xf]
      %v358 = vld [vmem:[%s198 + $0x22c] sm:$0xf]
      %v359 = vld [vmem:[%s198 + $0x230] sm:$0xf]
      %v360 = vld [vmem:[%s198 + $0x234] sm:$0xf]
      %v361 = vld [vmem:[%s198 + $0x238] sm:$0xf]
      %v362 = vld [vmem:[%s198 + $0x23c] sm:$0xf]
      %v363 = vld [vmem:[%s198 + $0x240] sm:$0xf]
      %v364 = vld [vmem:[%s198 + $0x244] sm:$0xf]
      %v365 = vld [vmem:[%s198 + $0x248] sm:$0xf]
      %v366 = vld [vmem:[%s198 + $0x24c] sm:$0xf]
      %v367 = vld [vmem:[%s198 + $0x250] sm:$0xf]
      %v368 = vld [vmem:[%s198 + $0x254] sm:$0xf]
      %v369 = vld [vmem:[%s198 + $0x258] sm:$0xf]
      %v370 = vld [vmem:[%s198 + $0x25c] sm:$0xf]
      %v371 = vld [vmem:[%s198 + $0x260] sm:$0xf]
      %v372 = vld [vmem:[%s198 + $0x264] sm:$0xf]
      %v373 = vld [vmem:[%s198 + $0x268] sm:$0xf]
      %v374 = vld [vmem:[%s198 + $0x26c] sm:$0xf]
      %v375 = vld [vmem:[%s198 + $0x270] sm:$0xf]
      %v376 = vld [vmem:[%s198 + $0x274] sm:$0xf]
      %v377 = vld [vmem:[%s198 + $0x278] sm:$0xf]
      %v378 = vld [vmem:[%s198 + $0x27c] sm:$0xf]
      %v379 = vld [vmem:[%s198 + $0x280] sm:$0xf]
      %v380 = vld [vmem:[%s198 + $0x284] sm:$0xf]
      %v381 = vld [vmem:[%s198 + $0x288] sm:$0xf]
      %v382 = vld [vmem:[%s198 + $0x28c] sm:$0xf]
      %v383 = vld [vmem:[%s198 + $0x290] sm:$0xf]
      %v384 = vld [vmem:[%s198 + $0x294] sm:$0xf]
      %v385 = vld [vmem:[%s198 + $0x298] sm:$0xf]
      %v386 = vld [vmem:[%s198 + $0x29c] sm:$0xf]
      %v387 = vld [vmem:[%s198 + $0x2a0] sm:$0xf]
      %v388 = vld [vmem:[%s198 + $0x2a4] sm:$0xf]
      %v389 = vld [vmem:[%s198 + $0x2a8] sm:$0xf]
      %v390 = vld [vmem:[%s198 + $0x2ac] sm:$0xf]
      %v391 = vld [vmem:[%s198 + $0x2b0] sm:$0xf]
      %v392 = vld [vmem:[%s198 + $0x2b4] sm:$0xf]
      %v393 = vld [vmem:[%s198 + $0x2b8] sm:$0xf]
      %v394 = vld [vmem:[%s198 + $0x2bc] sm:$0xf]
      %v395 = vld [vmem:[%s198 + $0x2c0] sm:$0xf]
      %v396 = vld [vmem:[%s198 + $0x2c4] sm:$0xf]
      %v397 = vld [vmem:[%s198 + $0x2c8] sm:$0xf]
      %v398 = vld [vmem:[%s198 + $0x2cc] sm:$0xf]
      %v399 = vld [vmem:[%s198 + $0x2d0] sm:$0xf]
      %v400 = vld [vmem:[%s198 + $0x2d4] sm:$0xf]
      %v401 = vld [vmem:[%s198 + $0x2d8] sm:$0xf]
      %v402 = vld [vmem:[%s198 + $0x2dc] sm:$0xf]
      %v403 = vld [vmem:[%s198 + $0x2e0] sm:$0xf]
      %v404 = vld [vmem:[%s198 + $0x2e4] sm:$0xf]
      %v405 = vld [vmem:[%s198 + $0x2e8] sm:$0xf]
      %v406 = vld [vmem:[%s198 + $0x2ec] sm:$0xf]
      %v407 = vld [vmem:[%s198 + $0x2f0] sm:$0xf]
      %v408 = vld [vmem:[%s198 + $0x2f4] sm:$0xf]
      %v409 = vld [vmem:[%s198 + $0x2f8] sm:$0xf]
      %v410 = vld [vmem:[%s198 + $0x2fc] sm:$0xf]
      %v411 = vld [vmem:[%s198 + $0x300] sm:$0xf]
      %v412 = vld [vmem:[%s198 + $0x304] sm:$0xf]
      %v413 = vld [vmem:[%s198 + $0x308] sm:$0xf]
      %v414 = vld [vmem:[%s198 + $0x30c] sm:$0xf]
      %v415 = vld [vmem:[%s198 + $0x310] sm:$0xf]
      %v416 = vld [vmem:[%s198 + $0x314] sm:$0xf]
      %v417 = vld [vmem:[%s198 + $0x318] sm:$0xf]
      %v418 = vld [vmem:[%s198 + $0x31c] sm:$0xf]
      %v419 = vld [vmem:[%s198 + $0x320] sm:$0xf]
      %v420 = vld [vmem:[%s198 + $0x324] sm:$0xf]
      %v421 = vld [vmem:[%s198 + $0x328] sm:$0xf]
      %v422 = vld [vmem:[%s198 + $0x32c] sm:$0xf]
      %v423 = vld [vmem:[%s198 + $0x330] sm:$0xf]
      %v424 = vld [vmem:[%s198 + $0x334] sm:$0xf]
      %v425 = vld [vmem:[%s198 + $0x338] sm:$0xf]
      %v426 = vld [vmem:[%s198 + $0x33c] sm:$0xf]
      %v427 = vld [vmem:[%s198 + $0x340] sm:$0xf]
      %v428 = vld [vmem:[%s198 + $0x344] sm:$0xf]
      %v429 = vld [vmem:[%s198 + $0x348] sm:$0xf]
      %v430 = vld [vmem:[%s198 + $0x34c] sm:$0xf]
      %v431 = vld [vmem:[%s198 + $0x350] sm:$0xf]
      %v432 = vld [vmem:[%s198 + $0x354] sm:$0xf]
      %v433 = vld [vmem:[%s198 + $0x358] sm:$0xf]
      %v434 = vld [vmem:[%s198 + $0x35c] sm:$0xf]
      %v435 = vld [vmem:[%s198 + $0x360] sm:$0xf]
      %v436 = vld [vmem:[%s198 + $0x364] sm:$0xf]
      %v437 = vld [vmem:[%s198 + $0x368] sm:$0xf]
      %v438 = vld [vmem:[%s198 + $0x36c] sm:$0xf]
      %v439 = vld [vmem:[%s198 + $0x370] sm:$0xf]
      %v440 = vld [vmem:[%s198 + $0x374] sm:$0xf]
      %v441 = vld [vmem:[%s198 + $0x378] sm:$0xf]
      %v442 = vld [vmem:[%s198 + $0x37c] sm:$0xf]
      %v443 = vld [vmem:[%s198 + $0x380] sm:$0xf]
      %v444 = vld [vmem:[%s198 + $0x384] sm:$0xf]
      %v445 = vld [vmem:[%s198 + $0x388] sm:$0xf]
      %v446 = vld [vmem:[%s198 + $0x38c] sm:$0xf]
      %v447 = vld [vmem:[%s198 + $0x390] sm:$0xf]
      %v448 = vld [vmem:[%s198 + $0x394] sm:$0xf]
      %v449 = vld [vmem:[%s198 + $0x398] sm:$0xf]
      %v450 = vld [vmem:[%s198 + $0x39c] sm:$0xf]
      %v451 = vld [vmem:[%s198 + $0x3a0] sm:$0xf]
      %v452 = vld [vmem:[%s198 + $0x3a4] sm:$0xf]
      %v453 = vld [vmem:[%s198 + $0x3a8] sm:$0xf]
      %v454 = vld [vmem:[%s198 + $0x3ac] sm:$0xf]
      %v455 = vld [vmem:[%s198 + $0x3b0] sm:$0xf]
      %v456 = vld [vmem:[%s198 + $0x3b4] sm:$0xf]
      %v457 = vld [vmem:[%s198 + $0x3b8] sm:$0xf]
      %v458 = vld [vmem:[%s198 + $0x3bc] sm:$0xf]
      %v459 = vld [vmem:[%s198 + $0x3c0] sm:$0xf]
      %v460 = vld [vmem:[%s198 + $0x3c4] sm:$0xf]
      %v461 = vld [vmem:[%s198 + $0x3c8] sm:$0xf]
      %v462 = vld [vmem:[%s198 + $0x3cc] sm:$0xf]
      %v463 = vld [vmem:[%s198 + $0x3d0] sm:$0xf]
      %v464 = vld [vmem:[%s198 + $0x3d4] sm:$0xf]
      %v465 = vld [vmem:[%s198 + $0x3d8] sm:$0xf]
      %v466 = vld [vmem:[%s198 + $0x3dc] sm:$0xf]
      %v467 = vld [vmem:[%s198 + $0x3e0] sm:$0xf]
      %v468 = vld [vmem:[%s198 + $0x3e4] sm:$0xf]
      %v469 = vld [vmem:[%s198 + $0x3e8] sm:$0xf]
      %v470 = vld [vmem:[%s198 + $0x3ec] sm:$0xf]
      %v471 = vld [vmem:[%s198 + $0x3f0] sm:$0xf]
      %v472 = vld [vmem:[%s198 + $0x3f4] sm:$0xf]
      %v473 = vld [vmem:[%s198 + $0x3f8] sm:$0xf]
      %v474 = vld [vmem:[%s198 + $0x3fc] sm:$0xf]
      %v475 = vld [vmem:[%s207] sm:$0xf]
      %v476 = vld [vmem:[%s207 + $0x4] sm:$0xf]
      %v733 = vunpack.c.l.b16 %v219
      %v734 = vunpack.c.l.b16 %v220
      %v735 = vunpack.c.l.b16 %v221
      %v736 = vunpack.c.l.b16 %v222
      %v737 = vunpack.c.l.b16 %v223
      %v738 = vunpack.c.l.b16 %v224
      %v739 = vunpack.c.l.b16 %v225
      %v740 = vunpack.c.l.b16 %v226
      %v741 = vunpack.c.l.b16 %v227
      %v742 = vunpack.c.l.b16 %v228
      %v743 = vunpack.c.l.b16 %v229
      %v744 = vunpack.c.l.b16 %v230
      %v745 = vunpack.c.l.b16 %v231
      %v746 = vunpack.c.l.b16 %v232
      %v747 = vunpack.c.l.b16 %v233
      %v748 = vunpack.c.l.b16 %v234
      %v749 = vunpack.c.l.b16 %v235
      %v750 = vunpack.c.l.b16 %v236
      %v751 = vunpack.c.l.b16 %v237
      %v752 = vunpack.c.l.b16 %v238
      %v753 = vunpack.c.l.b16 %v239
      %v754 = vunpack.c.l.b16 %v240
      %v755 = vunpack.c.l.b16 %v241
      %v756 = vunpack.c.l.b16 %v242
      %v757 = vunpack.c.l.b16 %v243
      %v758 = vunpack.c.l.b16 %v244
      %v759 = vunpack.c.l.b16 %v245
      %v760 = vunpack.c.l.b16 %v246
      %v761 = vunpack.c.l.b16 %v247
      %v762 = vunpack.c.l.b16 %v248
      %v763 = vunpack.c.l.b16 %v249
      %v764 = vunpack.c.l.b16 %v250
      %v765 = vunpack.c.l.b16 %v251
      %v766 = vunpack.c.l.b16 %v252
      %v767 = vunpack.c.l.b16 %v253
      %v768 = vunpack.c.l.b16 %v254
      %v769 = vunpack.c.l.b16 %v255
      %v770 = vunpack.c.l.b16 %v256
      %v771 = vunpack.c.l.b16 %v257
      %v772 = vunpack.c.l.b16 %v258
      %v773 = vunpack.c.l.b16 %v259
      %v774 = vunpack.c.l.b16 %v260
      %v775 = vunpack.c.l.b16 %v261
      %v776 = vunpack.c.l.b16 %v262
      %v777 = vunpack.c.l.b16 %v263
      %v778 = vunpack.c.l.b16 %v264
      %v779 = vunpack.c.l.b16 %v265
      %v780 = vunpack.c.l.b16 %v266
      %v781 = vunpack.c.l.b16 %v267
      %v782 = vunpack.c.l.b16 %v268
      %v783 = vunpack.c.l.b16 %v269
      %v784 = vunpack.c.l.b16 %v270
      %v785 = vunpack.c.l.b16 %v271
      %v786 = vunpack.c.l.b16 %v272
      %v787 = vunpack.c.l.b16 %v273
      %v788 = vunpack.c.l.b16 %v274
      %v789 = vunpack.c.l.b16 %v275
      %v790 = vunpack.c.l.b16 %v276
      %v791 = vunpack.c.l.b16 %v277
      %v792 = vunpack.c.l.b16 %v278
      %v793 = vunpack.c.l.b16 %v279
      %v794 = vunpack.c.l.b16 %v280
      %v795 = vunpack.c.l.b16 %v281
      %v796 = vunpack.c.l.b16 %v282
      %v797 = vunpack.c.l.b16 %v283
      %v798 = vunpack.c.l.b16 %v284
      %v799 = vunpack.c.l.b16 %v285
      %v800 = vunpack.c.l.b16 %v286
      %v801 = vunpack.c.l.b16 %v287
      %v802 = vunpack.c.l.b16 %v288
      %v803 = vunpack.c.l.b16 %v289
      %v804 = vunpack.c.l.b16 %v290
      %v805 = vunpack.c.l.b16 %v291
      %v806 = vunpack.c.l.b16 %v292
      %v807 = vunpack.c.l.b16 %v293
      %v808 = vunpack.c.l.b16 %v294
      %v809 = vunpack.c.l.b16 %v295
      %v810 = vunpack.c.l.b16 %v296
      %v811 = vunpack.c.l.b16 %v297
      %v812 = vunpack.c.l.b16 %v298
      %v813 = vunpack.c.l.b16 %v299
      %v814 = vunpack.c.l.b16 %v300
      %v815 = vunpack.c.l.b16 %v301
      %v816 = vunpack.c.l.b16 %v302
      %v817 = vunpack.c.l.b16 %v303
      %v818 = vunpack.c.l.b16 %v304
      %v819 = vunpack.c.l.b16 %v305
      %v820 = vunpack.c.l.b16 %v306
      %v821 = vunpack.c.l.b16 %v307
      %v822 = vunpack.c.l.b16 %v308
      %v823 = vunpack.c.l.b16 %v309
      %v824 = vunpack.c.l.b16 %v310
      %v825 = vunpack.c.l.b16 %v311
      %v826 = vunpack.c.l.b16 %v312
      %v827 = vunpack.c.l.b16 %v313
      %v828 = vunpack.c.l.b16 %v314
      %v829 = vunpack.c.l.b16 %v315
      %v830 = vunpack.c.l.b16 %v316
      %v831 = vunpack.c.l.b16 %v317
      %v832 = vunpack.c.l.b16 %v318
      %v833 = vunpack.c.l.b16 %v319
      %v834 = vunpack.c.l.b16 %v320
      %v835 = vunpack.c.l.b16 %v321
      %v836 = vunpack.c.l.b16 %v322
      %v837 = vunpack.c.l.b16 %v323
      %v838 = vunpack.c.l.b16 %v324
      %v839 = vunpack.c.l.b16 %v325
      %v840 = vunpack.c.l.b16 %v326
      %v841 = vunpack.c.l.b16 %v327
      %v842 = vunpack.c.l.b16 %v328
      %v843 = vunpack.c.l.b16 %v329
      %v844 = vunpack.c.l.b16 %v330
      %v845 = vunpack.c.l.b16 %v331
      %v846 = vunpack.c.l.b16 %v332
      %v847 = vunpack.c.l.b16 %v333
      %v848 = vunpack.c.l.b16 %v334
      %v849 = vunpack.c.l.b16 %v335
      %v850 = vunpack.c.l.b16 %v336
      %v851 = vunpack.c.l.b16 %v337
      %v852 = vunpack.c.l.b16 %v338
      %v853 = vunpack.c.l.b16 %v339
      %v854 = vunpack.c.l.b16 %v340
      %v855 = vunpack.c.l.b16 %v341
      %v856 = vunpack.c.l.b16 %v342
      %v857 = vunpack.c.l.b16 %v343
      %v858 = vunpack.c.l.b16 %v344
      %v859 = vunpack.c.l.b16 %v345
      %v860 = vunpack.c.l.b16 %v346
      %v861 = vunpack.c.l.b16 %v347
      %v862 = vunpack.c.l.b16 %v348
      %v863 = vunpack.c.l.b16 %v349
      %v864 = vunpack.c.l.b16 %v350
      %v865 = vunpack.c.l.b16 %v351
      %v866 = vunpack.c.l.b16 %v352
      %v867 = vunpack.c.l.b16 %v353
      %v868 = vunpack.c.l.b16 %v354
      %v869 = vunpack.c.l.b16 %v355
      %v870 = vunpack.c.l.b16 %v356
      %v871 = vunpack.c.l.b16 %v357
      %v872 = vunpack.c.l.b16 %v358
      %v873 = vunpack.c.l.b16 %v359
      %v874 = vunpack.c.l.b16 %v360
      %v875 = vunpack.c.l.b16 %v361
      %v876 = vunpack.c.l.b16 %v362
      %v877 = vunpack.c.l.b16 %v363
      %v878 = vunpack.c.l.b16 %v364
      %v879 = vunpack.c.l.b16 %v365
      %v880 = vunpack.c.l.b16 %v366
      %v881 = vunpack.c.l.b16 %v367
      %v882 = vunpack.c.l.b16 %v368
      %v883 = vunpack.c.l.b16 %v369
      %v884 = vunpack.c.l.b16 %v370
      %v885 = vunpack.c.l.b16 %v371
      %v886 = vunpack.c.l.b16 %v372
      %v887 = vunpack.c.l.b16 %v373
      %v888 = vunpack.c.l.b16 %v374
      %v889 = vunpack.c.l.b16 %v375
      %v890 = vunpack.c.l.b16 %v376
      %v891 = vunpack.c.l.b16 %v377
      %v892 = vunpack.c.l.b16 %v378
      %v893 = vunpack.c.l.b16 %v379
      %v894 = vunpack.c.l.b16 %v380
      %v895 = vunpack.c.l.b16 %v381
      %v896 = vunpack.c.l.b16 %v382
      %v897 = vunpack.c.l.b16 %v383
      %v898 = vunpack.c.l.b16 %v384
      %v899 = vunpack.c.l.b16 %v385
      %v900 = vunpack.c.l.b16 %v386
      %v901 = vunpack.c.l.b16 %v387
      %v902 = vunpack.c.l.b16 %v388
      %v903 = vunpack.c.l.b16 %v389
      %v904 = vunpack.c.l.b16 %v390
      %v905 = vunpack.c.l.b16 %v391
      %v906 = vunpack.c.l.b16 %v392
      %v907 = vunpack.c.l.b16 %v393
      %v908 = vunpack.c.l.b16 %v394
      %v909 = vunpack.c.l.b16 %v395
      %v910 = vunpack.c.l.b16 %v396
      %v911 = vunpack.c.l.b16 %v397
      %v912 = vunpack.c.l.b16 %v398
      %v913 = vunpack.c.l.b16 %v399
      %v914 = vunpack.c.l.b16 %v400
      %v915 = vunpack.c.l.b16 %v401
      %v916 = vunpack.c.l.b16 %v402
      %v917 = vunpack.c.l.b16 %v403
      %v918 = vunpack.c.l.b16 %v404
      %v919 = vunpack.c.l.b16 %v405
      %v920 = vunpack.c.l.b16 %v406
      %v921 = vunpack.c.l.b16 %v407
      %v922 = vunpack.c.l.b16 %v408
      %v923 = vunpack.c.l.b16 %v409
      %v924 = vunpack.c.l.b16 %v410
      %v925 = vunpack.c.l.b16 %v411
      %v926 = vunpack.c.l.b16 %v412
      %v927 = vunpack.c.l.b16 %v413
      %v928 = vunpack.c.l.b16 %v414
      %v929 = vunpack.c.l.b16 %v415
      %v930 = vunpack.c.l.b16 %v416
      %v931 = vunpack.c.l.b16 %v417
      %v932 = vunpack.c.l.b16 %v418
      %v933 = vunpack.c.l.b16 %v419
      %v934 = vunpack.c.l.b16 %v420
      %v935 = vunpack.c.l.b16 %v421
      %v936 = vunpack.c.l.b16 %v422
      %v937 = vunpack.c.l.b16 %v423
      %v938 = vunpack.c.l.b16 %v424
      %v939 = vunpack.c.l.b16 %v425
      %v940 = vunpack.c.l.b16 %v426
      %v941 = vunpack.c.l.b16 %v427
      %v942 = vunpack.c.l.b16 %v428
      %v943 = vunpack.c.l.b16 %v429
      %v944 = vunpack.c.l.b16 %v430
      %v945 = vunpack.c.l.b16 %v431
      %v946 = vunpack.c.l.b16 %v432
      %v947 = vunpack.c.l.b16 %v433
      %v948 = vunpack.c.l.b16 %v434
      %v949 = vunpack.c.l.b16 %v435
      %v950 = vunpack.c.l.b16 %v436
      %v951 = vunpack.c.l.b16 %v437
      %v952 = vunpack.c.l.b16 %v438
      %v953 = vunpack.c.l.b16 %v439
      %v954 = vunpack.c.l.b16 %v440
      %v955 = vunpack.c.l.b16 %v441
      %v956 = vunpack.c.l.b16 %v442
      %v957 = vunpack.c.l.b16 %v443
      %v958 = vunpack.c.l.b16 %v444
      %v959 = vunpack.c.l.b16 %v445
      %v960 = vunpack.c.l.b16 %v446
      %v961 = vunpack.c.l.b16 %v447
      %v962 = vunpack.c.l.b16 %v448
      %v963 = vunpack.c.l.b16 %v449
      %v964 = vunpack.c.l.b16 %v450
      %v965 = vunpack.c.l.b16 %v451
      %v966 = vunpack.c.l.b16 %v452
      %v967 = vunpack.c.l.b16 %v453
      %v968 = vunpack.c.l.b16 %v454
      %v969 = vunpack.c.l.b16 %v455
      %v970 = vunpack.c.l.b16 %v456
      %v971 = vunpack.c.l.b16 %v457
      %v972 = vunpack.c.l.b16 %v458
      %v973 = vunpack.c.l.b16 %v459
      %v974 = vunpack.c.l.b16 %v460
      %v975 = vunpack.c.l.b16 %v461
      %v976 = vunpack.c.l.b16 %v462
      %v977 = vunpack.c.l.b16 %v463
      %v978 = vunpack.c.l.b16 %v464
      %v979 = vunpack.c.l.b16 %v465
      %v980 = vunpack.c.l.b16 %v466
      %v981 = vunpack.c.l.b16 %v467
      %v982 = vunpack.c.l.b16 %v468
      %v983 = vunpack.c.l.b16 %v469
      %v984 = vunpack.c.l.b16 %v470
      %v985 = vunpack.c.l.b16 %v471
      %v986 = vunpack.c.l.b16 %v472
      %v987 = vunpack.c.l.b16 %v473
      %v988 = vunpack.c.l.b16 %v474
      %v989 = vpack.c.b16 %v734, %v733
      %v990 = vpack.c.b16 %v736, %v735
      %v991 = vpack.c.b16 %v738, %v737
      %v992 = vpack.c.b16 %v740, %v739
      %v993 = vpack.c.b16 %v742, %v741
      %v994 = vpack.c.b16 %v744, %v743
      %v995 = vpack.c.b16 %v746, %v745
      %v996 = vpack.c.b16 %v748, %v747
      %v997 = vpack.c.b16 %v750, %v749
      %v998 = vpack.c.b16 %v752, %v751
      %v999 = vpack.c.b16 %v754, %v753
      %v1000 = vpack.c.b16 %v756, %v755
      %v1001 = vpack.c.b16 %v758, %v757
      %v1002 = vpack.c.b16 %v760, %v759
      %v1003 = vpack.c.b16 %v762, %v761
      %v1004 = vpack.c.b16 %v764, %v763
      %v1005 = vpack.c.b16 %v766, %v765
      %v1006 = vpack.c.b16 %v768, %v767
      %v1007 = vpack.c.b16 %v770, %v769
      %v1008 = vpack.c.b16 %v772, %v771
      %v1009 = vpack.c.b16 %v774, %v773
      %v1010 = vpack.c.b16 %v776, %v775
      %v1011 = vpack.c.b16 %v778, %v777
      %v1012 = vpack.c.b16 %v780, %v779
      %v1013 = vpack.c.b16 %v782, %v781
      %v1014 = vpack.c.b16 %v784, %v783
      %v1015 = vpack.c.b16 %v786, %v785
      %v1016 = vpack.c.b16 %v788, %v787
      %v1017 = vpack.c.b16 %v790, %v789
      %v1018 = vpack.c.b16 %v792, %v791
      %v1019 = vpack.c.b16 %v794, %v793
      %v1020 = vpack.c.b16 %v796, %v795
      %v1021 = vpack.c.b16 %v798, %v797
      %v1022 = vpack.c.b16 %v800, %v799
      %v1023 = vpack.c.b16 %v802, %v801
      %v1024 = vpack.c.b16 %v804, %v803
      %v1025 = vpack.c.b16 %v806, %v805
      %v1026 = vpack.c.b16 %v808, %v807
      %v1027 = vpack.c.b16 %v810, %v809
      %v1028 = vpack.c.b16 %v812, %v811
      %v1029 = vpack.c.b16 %v814, %v813
      %v1030 = vpack.c.b16 %v816, %v815
      %v1031 = vpack.c.b16 %v818, %v817
      %v1032 = vpack.c.b16 %v820, %v819
      %v1033 = vpack.c.b16 %v822, %v821
      %v1034 = vpack.c.b16 %v824, %v823
      %v1035 = vpack.c.b16 %v826, %v825
      %v1036 = vpack.c.b16 %v828, %v827
      %v1037 = vpack.c.b16 %v830, %v829
      %v1038 = vpack.c.b16 %v832, %v831
      %v1039 = vpack.c.b16 %v834, %v833
      %v1040 = vpack.c.b16 %v836, %v835
      %v1041 = vpack.c.b16 %v838, %v837
      %v1042 = vpack.c.b16 %v840, %v839
      %v1043 = vpack.c.b16 %v842, %v841
      %v1044 = vpack.c.b16 %v844, %v843
      %v1045 = vpack.c.b16 %v846, %v845
      %v1046 = vpack.c.b16 %v848, %v847
      %v1047 = vpack.c.b16 %v850, %v849
      %v1048 = vpack.c.b16 %v852, %v851
      %v1049 = vpack.c.b16 %v854, %v853
      %v1050 = vpack.c.b16 %v856, %v855
      %v1051 = vpack.c.b16 %v858, %v857
      %v1052 = vpack.c.b16 %v860, %v859
      %v1053 = vpack.c.b16 %v862, %v861
      %v1054 = vpack.c.b16 %v864, %v863
      %v1055 = vpack.c.b16 %v866, %v865
      %v1056 = vpack.c.b16 %v868, %v867
      %v1057 = vpack.c.b16 %v870, %v869
      %v1058 = vpack.c.b16 %v872, %v871
      %v1059 = vpack.c.b16 %v874, %v873
      %v1060 = vpack.c.b16 %v876, %v875
      %v1061 = vpack.c.b16 %v878, %v877
      %v1062 = vpack.c.b16 %v880, %v879
      %v1063 = vpack.c.b16 %v882, %v881
      %v1064 = vpack.c.b16 %v884, %v883
      %v1065 = vpack.c.b16 %v886, %v885
      %v1066 = vpack.c.b16 %v888, %v887
      %v1067 = vpack.c.b16 %v890, %v889
      %v1068 = vpack.c.b16 %v892, %v891
      %v1069 = vpack.c.b16 %v894, %v893
      %v1070 = vpack.c.b16 %v896, %v895
      %v1071 = vpack.c.b16 %v898, %v897
      %v1072 = vpack.c.b16 %v900, %v899
      %v1073 = vpack.c.b16 %v902, %v901
      %v1074 = vpack.c.b16 %v904, %v903
      %v1075 = vpack.c.b16 %v906, %v905
      %v1076 = vpack.c.b16 %v908, %v907
      %v1077 = vpack.c.b16 %v910, %v909
      %v1078 = vpack.c.b16 %v912, %v911
      %v1079 = vpack.c.b16 %v914, %v913
      %v1080 = vpack.c.b16 %v916, %v915
      %v1081 = vpack.c.b16 %v918, %v917
      %v1082 = vpack.c.b16 %v920, %v919
      %v1083 = vpack.c.b16 %v922, %v921
      %v1084 = vpack.c.b16 %v924, %v923
      %v1085 = vpack.c.b16 %v926, %v925
      %v1086 = vpack.c.b16 %v928, %v927
      %v1087 = vpack.c.b16 %v930, %v929
      %v1088 = vpack.c.b16 %v932, %v931
      %v1089 = vpack.c.b16 %v934, %v933
      %v1090 = vpack.c.b16 %v936, %v935
      %v1091 = vpack.c.b16 %v938, %v937
      %v1092 = vpack.c.b16 %v940, %v939
      %v1093 = vpack.c.b16 %v942, %v941
      %v1094 = vpack.c.b16 %v944, %v943
      %v1095 = vpack.c.b16 %v946, %v945
      %v1096 = vpack.c.b16 %v948, %v947
      %v1097 = vpack.c.b16 %v950, %v949
      %v1098 = vpack.c.b16 %v952, %v951
      %v1099 = vpack.c.b16 %v954, %v953
      %v1100 = vpack.c.b16 %v956, %v955
      %v1101 = vpack.c.b16 %v958, %v957
      %v1102 = vpack.c.b16 %v960, %v959
      %v1103 = vpack.c.b16 %v962, %v961
      %v1104 = vpack.c.b16 %v964, %v963
      %v1105 = vpack.c.b16 %v966, %v965
      %v1106 = vpack.c.b16 %v968, %v967
      %v1107 = vpack.c.b16 %v970, %v969
      %v1108 = vpack.c.b16 %v972, %v971
      %v1109 = vpack.c.b16 %v974, %v973
      %v1110 = vpack.c.b16 %v976, %v975
      %v1111 = vpack.c.b16 %v978, %v977
      %v1112 = vpack.c.b16 %v980, %v979
      %v1113 = vpack.c.b16 %v982, %v981
      %v1114 = vpack.c.b16 %v984, %v983
      %v1115 = vpack.c.b16 %v986, %v985
      %v1116 = vpack.c.b16 %v988, %v987
      %v1119 = vunpack.c.l.b16 %v475
      %v1120 = vunpack.c.l.b16 %v476
      %v1121 = vpack.c.b16 %v1120, %v1119
      %vm1123 = vcmask 130048
      %v1125 = vsel %vm1123, %v989, 0
      %v1128 = vsel %vm1123, %v990, 0
      %v1131 = vsel %vm1123, %v991, 0
      %v1134 = vsel %vm1123, %v992, 0
      %v1137 = vsel %vm1123, %v993, 0
      %v1140 = vsel %vm1123, %v994, 0
      %v1143 = vsel %vm1123, %v995, 0
      %v1146 = vsel %vm1123, %v996, 0
      %v1149 = vsel %vm1123, %v997, 0
      %v1152 = vsel %vm1123, %v998, 0
      %v1155 = vsel %vm1123, %v999, 0
      %v1158 = vsel %vm1123, %v1000, 0
      %v1161 = vsel %vm1123, %v1001, 0
      %v1164 = vsel %vm1123, %v1002, 0
      %v1167 = vsel %vm1123, %v1003, 0
      %v1170 = vsel %vm1123, %v1004, 0
      %v1173 = vsel %vm1123, %v1005, 0
      %v1176 = vsel %vm1123, %v1006, 0
      %v1179 = vsel %vm1123, %v1007, 0
      %v1182 = vsel %vm1123, %v1008, 0
      %v1185 = vsel %vm1123, %v1009, 0
      %v1188 = vsel %vm1123, %v1010, 0
      %v1191 = vsel %vm1123, %v1011, 0
      %v1194 = vsel %vm1123, %v1012, 0
      %v1197 = vsel %vm1123, %v1013, 0
      %v1200 = vsel %vm1123, %v1014, 0
      %v1203 = vsel %vm1123, %v1015, 0
      %v1206 = vsel %vm1123, %v1016, 0
      %v1209 = vsel %vm1123, %v1017, 0
      %v1212 = vsel %vm1123, %v1018, 0
      %v1215 = vsel %vm1123, %v1019, 0
      %v1218 = vsel %vm1123, %v1020, 0
      %v1221 = vsel %vm1123, %v1021, 0
      %v1224 = vsel %vm1123, %v1022, 0
      %v1227 = vsel %vm1123, %v1023, 0
      %v1230 = vsel %vm1123, %v1024, 0
      %v1233 = vsel %vm1123, %v1025, 0
      %v1236 = vsel %vm1123, %v1026, 0
      %v1239 = vsel %vm1123, %v1027, 0
      %v1242 = vsel %vm1123, %v1028, 0
      %v1245 = vsel %vm1123, %v1029, 0
      %v1248 = vsel %vm1123, %v1030, 0
      %v1251 = vsel %vm1123, %v1031, 0
      %v1254 = vsel %vm1123, %v1032, 0
      %v1257 = vsel %vm1123, %v1033, 0
      %v1260 = vsel %vm1123, %v1034, 0
      %v1263 = vsel %vm1123, %v1035, 0
      %v1266 = vsel %vm1123, %v1036, 0
      %v1269 = vsel %vm1123, %v1037, 0
      %v1272 = vsel %vm1123, %v1038, 0
      %v1275 = vsel %vm1123, %v1039, 0
      %v1278 = vsel %vm1123, %v1040, 0
      %v1281 = vsel %vm1123, %v1041, 0
      %v1284 = vsel %vm1123, %v1042, 0
      %v1287 = vsel %vm1123, %v1043, 0
      %v1290 = vsel %vm1123, %v1044, 0
      %v1293 = vsel %vm1123, %v1045, 0
      %v1296 = vsel %vm1123, %v1046, 0
      %v1299 = vsel %vm1123, %v1047, 0
      %v1302 = vsel %vm1123, %v1048, 0
      %v1305 = vsel %vm1123, %v1049, 0
      %v1308 = vsel %vm1123, %v1050, 0
      %v1311 = vsel %vm1123, %v1051, 0
      %v1314 = vsel %vm1123, %v1052, 0
      %v1317 = vsel %vm1123, %v1053, 0
      %v1320 = vsel %vm1123, %v1054, 0
      %v1323 = vsel %vm1123, %v1055, 0
      %v1326 = vsel %vm1123, %v1056, 0
      %v1329 = vsel %vm1123, %v1057, 0
      %v1332 = vsel %vm1123, %v1058, 0
      %v1335 = vsel %vm1123, %v1059, 0
      %v1338 = vsel %vm1123, %v1060, 0
      %v1341 = vsel %vm1123, %v1061, 0
      %v1344 = vsel %vm1123, %v1062, 0
      %v1347 = vsel %vm1123, %v1063, 0
      %v1350 = vsel %vm1123, %v1064, 0
      %v1353 = vsel %vm1123, %v1065, 0
      %v1356 = vsel %vm1123, %v1066, 0
      %v1359 = vsel %vm1123, %v1067, 0
      %v1362 = vsel %vm1123, %v1068, 0
      %v1365 = vsel %vm1123, %v1069, 0
      %v1368 = vsel %vm1123, %v1070, 0
      %v1371 = vsel %vm1123, %v1071, 0
      %v1374 = vsel %vm1123, %v1072, 0
      %v1377 = vsel %vm1123, %v1073, 0
      %v1380 = vsel %vm1123, %v1074, 0
      %v1383 = vsel %vm1123, %v1075, 0
      %v1386 = vsel %vm1123, %v1076, 0
      %v1389 = vsel %vm1123, %v1077, 0
      %v1392 = vsel %vm1123, %v1078, 0
      %v1395 = vsel %vm1123, %v1079, 0
      %v1398 = vsel %vm1123, %v1080, 0
      %v1401 = vsel %vm1123, %v1081, 0
      %v1404 = vsel %vm1123, %v1082, 0
      %v1407 = vsel %vm1123, %v1083, 0
      %v1410 = vsel %vm1123, %v1084, 0
      %v1413 = vsel %vm1123, %v1085, 0
      %v1416 = vsel %vm1123, %v1086, 0
      %v1419 = vsel %vm1123, %v1087, 0
      %v1422 = vsel %vm1123, %v1088, 0
      %v1425 = vsel %vm1123, %v1089, 0
      %v1428 = vsel %vm1123, %v1090, 0
      %v1431 = vsel %vm1123, %v1091, 0
      %v1434 = vsel %vm1123, %v1092, 0
      %v1437 = vsel %vm1123, %v1093, 0
      %v1440 = vsel %vm1123, %v1094, 0
      %v1443 = vsel %vm1123, %v1095, 0
      %v1446 = vsel %vm1123, %v1096, 0
      %v1449 = vsel %vm1123, %v1097, 0
      %v1452 = vsel %vm1123, %v1098, 0
      %v1455 = vsel %vm1123, %v1099, 0
      %v1458 = vsel %vm1123, %v1100, 0
      %v1461 = vsel %vm1123, %v1101, 0
      %v1464 = vsel %vm1123, %v1102, 0
      %v1467 = vsel %vm1123, %v1103, 0
      %v1470 = vsel %vm1123, %v1104, 0
      %v1473 = vsel %vm1123, %v1105, 0
      %v1476 = vsel %vm1123, %v1106, 0
      %v1479 = vsel %vm1123, %v1107, 0
      %v1482 = vsel %vm1123, %v1108, 0
      %v1485 = vsel %vm1123, %v1109, 0
      %v1488 = vsel %vm1123, %v1110, 0
      %v1491 = vsel %vm1123, %v1111, 0
      %v1494 = vsel %vm1123, %v1112, 0
      %v1497 = vsel %vm1123, %v1113, 0
      %v1500 = vsel %vm1123, %v1114, 0
      %v1503 = vsel %vm1123, %v1115, 0
      %v1506 = vsel %vm1123, %v1116, 0
      %1508 = vmatpush.bf16.msra.mxu0 0
      %1509 = vmatpush.bf16.msra.mxu0 0
      %1510 = vmatpush.bf16.msra.mxu0 0
      %1511 = vmatpush.bf16.msra.mxu0 0
      %1512 = vmatpush.bf16.msra.mxu0 0
      %1513 = vmatpush.bf16.msra.mxu0 0
      %1514 = vmatpush.bf16.msra.mxu0 0
      %1515 = vmatpush.bf16.msra.mxu0 %v1121
      %1516 = vmatmul.bf16.gmra.mxu0 %v1125
      %v1517 = vpop.f32.mrf.mxu0
      %v1518 = vadd.f32 0.0, %v1517
      %v1519 = vpop.f32.mrf.mxu0
      %v1520 = vadd.f32 0.0, %v1519
      %1521 = vmatmul.bf16.gmra.mxu0 %v1128
      %v1522 = vpop.f32.mrf.mxu0
      %v1523 = vadd.f32 0.0, %v1522
      %v1524 = vpop.f32.mrf.mxu0
      %v1525 = vadd.f32 0.0, %v1524
      %1526 = vmatmul.bf16.gmra.mxu0 %v1131
      %v1527 = vpop.f32.mrf.mxu0
      %v1528 = vadd.f32 0.0, %v1527
      %v1529 = vpop.f32.mrf.mxu0
      %v1530 = vadd.f32 0.0, %v1529
      %1531 = vmatmul.bf16.gmra.mxu0 %v1134
      %v1532 = vpop.f32.mrf.mxu0
      %v1533 = vadd.f32 0.0, %v1532
      %v1534 = vpop.f32.mrf.mxu0
      %v1535 = vadd.f32 0.0, %v1534
      %1536 = vmatmul.bf16.gmra.mxu0 %v1137
      %v1537 = vpop.f32.mrf.mxu0
      %v1538 = vadd.f32 0.0, %v1537
      %v1539 = vpop.f32.mrf.mxu0
      %v1540 = vadd.f32 0.0, %v1539
      %1541 = vmatmul.bf16.gmra.mxu0 %v1140
      %v1542 = vpop.f32.mrf.mxu0
      %v1543 = vadd.f32 0.0, %v1542
      %v1544 = vpop.f32.mrf.mxu0
      %v1545 = vadd.f32 0.0, %v1544
      %1546 = vmatmul.bf16.gmra.mxu0 %v1143
      %v1547 = vpop.f32.mrf.mxu0
      %v1548 = vadd.f32 0.0, %v1547
      %v1549 = vpop.f32.mrf.mxu0
      %v1550 = vadd.f32 0.0, %v1549
      %1551 = vmatmul.bf16.gmra.mxu0 %v1146
      %v1552 = vpop.f32.mrf.mxu0
      %v1553 = vadd.f32 0.0, %v1552
      %v1554 = vpop.f32.mrf.mxu0
      %v1555 = vadd.f32 0.0, %v1554
      %1556 = vmatmul.bf16.gmra.mxu0 %v1149
      %v1557 = vpop.f32.mrf.mxu0
      %v1558 = vadd.f32 0.0, %v1557
      %v1559 = vpop.f32.mrf.mxu0
      %v1560 = vadd.f32 0.0, %v1559
      %1561 = vmatmul.bf16.gmra.mxu0 %v1152
      %v1562 = vpop.f32.mrf.mxu0
      %v1563 = vadd.f32 0.0, %v1562
      %v1564 = vpop.f32.mrf.mxu0
      %v1565 = vadd.f32 0.0, %v1564
      %1566 = vmatmul.bf16.gmra.mxu0 %v1155
      %v1567 = vpop.f32.mrf.mxu0
      %v1568 = vadd.f32 0.0, %v1567
      %v1569 = vpop.f32.mrf.mxu0
      %v1570 = vadd.f32 0.0, %v1569
      %1571 = vmatmul.bf16.gmra.mxu0 %v1158
      %v1572 = vpop.f32.mrf.mxu0
      %v1573 = vadd.f32 0.0, %v1572
      %v1574 = vpop.f32.mrf.mxu0
      %v1575 = vadd.f32 0.0, %v1574
      %1576 = vmatmul.bf16.gmra.mxu0 %v1161
      %v1577 = vpop.f32.mrf.mxu0
      %v1578 = vadd.f32 0.0, %v1577
      %v1579 = vpop.f32.mrf.mxu0
      %v1580 = vadd.f32 0.0, %v1579
      %1581 = vmatmul.bf16.gmra.mxu0 %v1164
      %v1582 = vpop.f32.mrf.mxu0
      %v1583 = vadd.f32 0.0, %v1582
      %v1584 = vpop.f32.mrf.mxu0
      %v1585 = vadd.f32 0.0, %v1584
      %1586 = vmatmul.bf16.gmra.mxu0 %v1167
      %v1587 = vpop.f32.mrf.mxu0
      %v1588 = vadd.f32 0.0, %v1587
      %v1589 = vpop.f32.mrf.mxu0
      %v1590 = vadd.f32 0.0, %v1589
      %1591 = vmatmul.bf16.gmra.mxu0 %v1170
      %v1592 = vpop.f32.mrf.mxu0
      %v1593 = vadd.f32 0.0, %v1592
      %v1594 = vpop.f32.mrf.mxu0
      %v1595 = vadd.f32 0.0, %v1594
      %1596 = vmatmul.bf16.gmra.mxu0 %v1173
      %v1597 = vpop.f32.mrf.mxu0
      %v1598 = vadd.f32 0.0, %v1597
      %v1599 = vpop.f32.mrf.mxu0
      %v1600 = vadd.f32 0.0, %v1599
      %1601 = vmatmul.bf16.gmra.mxu0 %v1176
      %v1602 = vpop.f32.mrf.mxu0
      %v1603 = vadd.f32 0.0, %v1602
      %v1604 = vpop.f32.mrf.mxu0
      %v1605 = vadd.f32 0.0, %v1604
      %1606 = vmatmul.bf16.gmra.mxu0 %v1179
      %v1607 = vpop.f32.mrf.mxu0
      %v1608 = vadd.f32 0.0, %v1607
      %v1609 = vpop.f32.mrf.mxu0
      %v1610 = vadd.f32 0.0, %v1609
      %1611 = vmatmul.bf16.gmra.mxu0 %v1182
      %v1612 = vpop.f32.mrf.mxu0
      %v1613 = vadd.f32 0.0, %v1612
      %v1614 = vpop.f32.mrf.mxu0
      %v1615 = vadd.f32 0.0, %v1614
      %1616 = vmatmul.bf16.gmra.mxu0 %v1185
      %v1617 = vpop.f32.mrf.mxu0
      %v1618 = vadd.f32 0.0, %v1617
      %v1619 = vpop.f32.mrf.mxu0
      %v1620 = vadd.f32 0.0, %v1619
      %1621 = vmatmul.bf16.gmra.mxu0 %v1188
      %v1622 = vpop.f32.mrf.mxu0
      %v1623 = vadd.f32 0.0, %v1622
      %v1624 = vpop.f32.mrf.mxu0
      %v1625 = vadd.f32 0.0, %v1624
      %1626 = vmatmul.bf16.gmra.mxu0 %v1191
      %v1627 = vpop.f32.mrf.mxu0
      %v1628 = vadd.f32 0.0, %v1627
      %v1629 = vpop.f32.mrf.mxu0
      %v1630 = vadd.f32 0.0, %v1629
      %1631 = vmatmul.bf16.gmra.mxu0 %v1194
      %v1632 = vpop.f32.mrf.mxu0
      %v1633 = vadd.f32 0.0, %v1632
      %v1634 = vpop.f32.mrf.mxu0
      %v1635 = vadd.f32 0.0, %v1634
      %1636 = vmatmul.bf16.gmra.mxu0 %v1197
      %v1637 = vpop.f32.mrf.mxu0
      %v1638 = vadd.f32 0.0, %v1637
      %v1639 = vpop.f32.mrf.mxu0
      %v1640 = vadd.f32 0.0, %v1639
      %1641 = vmatmul.bf16.gmra.mxu0 %v1200
      %v1642 = vpop.f32.mrf.mxu0
      %v1643 = vadd.f32 0.0, %v1642
      %v1644 = vpop.f32.mrf.mxu0
      %v1645 = vadd.f32 0.0, %v1644
      %1646 = vmatmul.bf16.gmra.mxu0 %v1203
      %v1647 = vpop.f32.mrf.mxu0
      %v1648 = vadd.f32 0.0, %v1647
      %v1649 = vpop.f32.mrf.mxu0
      %v1650 = vadd.f32 0.0, %v1649
      %1651 = vmatmul.bf16.gmra.mxu0 %v1206
      %v1652 = vpop.f32.mrf.mxu0
      %v1653 = vadd.f32 0.0, %v1652
      %v1654 = vpop.f32.mrf.mxu0
      %v1655 = vadd.f32 0.0, %v1654
      %1656 = vmatmul.bf16.gmra.mxu0 %v1209
      %v1657 = vpop.f32.mrf.mxu0
      %v1658 = vadd.f32 0.0, %v1657
      %v1659 = vpop.f32.mrf.mxu0
      %v1660 = vadd.f32 0.0, %v1659
      %1661 = vmatmul.bf16.gmra.mxu0 %v1212
      %v1662 = vpop.f32.mrf.mxu0
      %v1663 = vadd.f32 0.0, %v1662
      %v1664 = vpop.f32.mrf.mxu0
      %v1665 = vadd.f32 0.0, %v1664
      %1666 = vmatmul.bf16.gmra.mxu0 %v1215
      %v1667 = vpop.f32.mrf.mxu0
      %v1668 = vadd.f32 0.0, %v1667
      %v1669 = vpop.f32.mrf.mxu0
      %v1670 = vadd.f32 0.0, %v1669
      %1671 = vmatmul.bf16.gmra.mxu0 %v1218
      %v1672 = vpop.f32.mrf.mxu0
      %v1673 = vadd.f32 0.0, %v1672
      %v1674 = vpop.f32.mrf.mxu0
      %v1675 = vadd.f32 0.0, %v1674
      %1676 = vmatmul.bf16.gmra.mxu0 %v1221
      %v1677 = vpop.f32.mrf.mxu0
      %v1678 = vadd.f32 0.0, %v1677
      %v1679 = vpop.f32.mrf.mxu0
      %v1680 = vadd.f32 0.0, %v1679
      %1681 = vmatmul.bf16.gmra.mxu0 %v1224
      %v1682 = vpop.f32.mrf.mxu0
      %v1683 = vadd.f32 0.0, %v1682
      %v1684 = vpop.f32.mrf.mxu0
      %v1685 = vadd.f32 0.0, %v1684
      %1686 = vmatmul.bf16.gmra.mxu0 %v1227
      %v1687 = vpop.f32.mrf.mxu0
      %v1688 = vadd.f32 0.0, %v1687
      %v1689 = vpop.f32.mrf.mxu0
      %v1690 = vadd.f32 0.0, %v1689
      %1691 = vmatmul.bf16.gmra.mxu0 %v1230
      %v1692 = vpop.f32.mrf.mxu0
      %v1693 = vadd.f32 0.0, %v1692
      %v1694 = vpop.f32.mrf.mxu0
      %v1695 = vadd.f32 0.0, %v1694
      %1696 = vmatmul.bf16.gmra.mxu0 %v1233
      %v1697 = vpop.f32.mrf.mxu0
      %v1698 = vadd.f32 0.0, %v1697
      %v1699 = vpop.f32.mrf.mxu0
      %v1700 = vadd.f32 0.0, %v1699
      %1701 = vmatmul.bf16.gmra.mxu0 %v1236
      %v1702 = vpop.f32.mrf.mxu0
      %v1703 = vadd.f32 0.0, %v1702
      %v1704 = vpop.f32.mrf.mxu0
      %v1705 = vadd.f32 0.0, %v1704
      %1706 = vmatmul.bf16.gmra.mxu0 %v1239
      %v1707 = vpop.f32.mrf.mxu0
      %v1708 = vadd.f32 0.0, %v1707
      %v1709 = vpop.f32.mrf.mxu0
      %v1710 = vadd.f32 0.0, %v1709
      %1711 = vmatmul.bf16.gmra.mxu0 %v1242
      %v1712 = vpop.f32.mrf.mxu0
      %v1713 = vadd.f32 0.0, %v1712
      %v1714 = vpop.f32.mrf.mxu0
      %v1715 = vadd.f32 0.0, %v1714
      %1716 = vmatmul.bf16.gmra.mxu0 %v1245
      %v1717 = vpop.f32.mrf.mxu0
      %v1718 = vadd.f32 0.0, %v1717
      %v1719 = vpop.f32.mrf.mxu0
      %v1720 = vadd.f32 0.0, %v1719
      %1721 = vmatmul.bf16.gmra.mxu0 %v1248
      %v1722 = vpop.f32.mrf.mxu0
      %v1723 = vadd.f32 0.0, %v1722
      %v1724 = vpop.f32.mrf.mxu0
      %v1725 = vadd.f32 0.0, %v1724
      %1726 = vmatmul.bf16.gmra.mxu0 %v1251
      %v1727 = vpop.f32.mrf.mxu0
      %v1728 = vadd.f32 0.0, %v1727
      %v1729 = vpop.f32.mrf.mxu0
      %v1730 = vadd.f32 0.0, %v1729
      %1731 = vmatmul.bf16.gmra.mxu0 %v1254
      %v1732 = vpop.f32.mrf.mxu0
      %v1733 = vadd.f32 0.0, %v1732
      %v1734 = vpop.f32.mrf.mxu0
      %v1735 = vadd.f32 0.0, %v1734
      %1736 = vmatmul.bf16.gmra.mxu0 %v1257
      %v1737 = vpop.f32.mrf.mxu0
      %v1738 = vadd.f32 0.0, %v1737
      %v1739 = vpop.f32.mrf.mxu0
      %v1740 = vadd.f32 0.0, %v1739
      %1741 = vmatmul.bf16.gmra.mxu0 %v1260
      %v1742 = vpop.f32.mrf.mxu0
      %v1743 = vadd.f32 0.0, %v1742
      %v1744 = vpop.f32.mrf.mxu0
      %v1745 = vadd.f32 0.0, %v1744
      %1746 = vmatmul.bf16.gmra.mxu0 %v1263
      %v1747 = vpop.f32.mrf.mxu0
      %v1748 = vadd.f32 0.0, %v1747
      %v1749 = vpop.f32.mrf.mxu0
      %v1750 = vadd.f32 0.0, %v1749
      %1751 = vmatmul.bf16.gmra.mxu0 %v1266
      %v1752 = vpop.f32.mrf.mxu0
      %v1753 = vadd.f32 0.0, %v1752
      %v1754 = vpop.f32.mrf.mxu0
      %v1755 = vadd.f32 0.0, %v1754
      %1756 = vmatmul.bf16.gmra.mxu0 %v1269
      %v1757 = vpop.f32.mrf.mxu0
      %v1758 = vadd.f32 0.0, %v1757
      %v1759 = vpop.f32.mrf.mxu0
      %v1760 = vadd.f32 0.0, %v1759
      %1761 = vmatmul.bf16.gmra.mxu0 %v1272
      %v1762 = vpop.f32.mrf.mxu0
      %v1763 = vadd.f32 0.0, %v1762
      %v1764 = vpop.f32.mrf.mxu0
      %v1765 = vadd.f32 0.0, %v1764
      %1766 = vmatmul.bf16.gmra.mxu0 %v1275
      %v1767 = vpop.f32.mrf.mxu0
      %v1768 = vadd.f32 0.0, %v1767
      %v1769 = vpop.f32.mrf.mxu0
      %v1770 = vadd.f32 0.0, %v1769
      %1771 = vmatmul.bf16.gmra.mxu0 %v1278
      %v1772 = vpop.f32.mrf.mxu0
      %v1773 = vadd.f32 0.0, %v1772
      %v1774 = vpop.f32.mrf.mxu0
      %v1775 = vadd.f32 0.0, %v1774
      %1776 = vmatmul.bf16.gmra.mxu0 %v1281
      %v1777 = vpop.f32.mrf.mxu0
      %v1778 = vadd.f32 0.0, %v1777
      %v1779 = vpop.f32.mrf.mxu0
      %v1780 = vadd.f32 0.0, %v1779
      %1781 = vmatmul.bf16.gmra.mxu0 %v1284
      %v1782 = vpop.f32.mrf.mxu0
      %v1783 = vadd.f32 0.0, %v1782
      %v1784 = vpop.f32.mrf.mxu0
      %v1785 = vadd.f32 0.0, %v1784
      %1786 = vmatmul.bf16.gmra.mxu0 %v1287
      %v1787 = vpop.f32.mrf.mxu0
      %v1788 = vadd.f32 0.0, %v1787
      %v1789 = vpop.f32.mrf.mxu0
      %v1790 = vadd.f32 0.0, %v1789
      %1791 = vmatmul.bf16.gmra.mxu0 %v1290
      %v1792 = vpop.f32.mrf.mxu0
      %v1793 = vadd.f32 0.0, %v1792
      %v1794 = vpop.f32.mrf.mxu0
      %v1795 = vadd.f32 0.0, %v1794
      %1796 = vmatmul.bf16.gmra.mxu0 %v1293
      %v1797 = vpop.f32.mrf.mxu0
      %v1798 = vadd.f32 0.0, %v1797
      %v1799 = vpop.f32.mrf.mxu0
      %v1800 = vadd.f32 0.0, %v1799
      %1801 = vmatmul.bf16.gmra.mxu0 %v1296
      %v1802 = vpop.f32.mrf.mxu0
      %v1803 = vadd.f32 0.0, %v1802
      %v1804 = vpop.f32.mrf.mxu0
      %v1805 = vadd.f32 0.0, %v1804
      %1806 = vmatmul.bf16.gmra.mxu0 %v1299
      %v1807 = vpop.f32.mrf.mxu0
      %v1808 = vadd.f32 0.0, %v1807
      %v1809 = vpop.f32.mrf.mxu0
      %v1810 = vadd.f32 0.0, %v1809
      %1811 = vmatmul.bf16.gmra.mxu0 %v1302
      %v1812 = vpop.f32.mrf.mxu0
      %v1813 = vadd.f32 0.0, %v1812
      %v1814 = vpop.f32.mrf.mxu0
      %v1815 = vadd.f32 0.0, %v1814
      %1816 = vmatmul.bf16.gmra.mxu0 %v1305
      %v1817 = vpop.f32.mrf.mxu0
      %v1818 = vadd.f32 0.0, %v1817
      %v1819 = vpop.f32.mrf.mxu0
      %v1820 = vadd.f32 0.0, %v1819
      %1821 = vmatmul.bf16.gmra.mxu0 %v1308
      %v1822 = vpop.f32.mrf.mxu0
      %v1823 = vadd.f32 0.0, %v1822
      %v1824 = vpop.f32.mrf.mxu0
      %v1825 = vadd.f32 0.0, %v1824
      %1826 = vmatmul.bf16.gmra.mxu0 %v1311
      %v1827 = vpop.f32.mrf.mxu0
      %v1828 = vadd.f32 0.0, %v1827
      %v1829 = vpop.f32.mrf.mxu0
      %v1830 = vadd.f32 0.0, %v1829
      %1831 = vmatmul.bf16.gmra.mxu0 %v1314
      %v1832 = vpop.f32.mrf.mxu0
      %v1833 = vadd.f32 0.0, %v1832
      %v1834 = vpop.f32.mrf.mxu0
      %v1835 = vadd.f32 0.0, %v1834
      %1836 = vmatmul.bf16.gmra.mxu0 %v1317
      %v1837 = vpop.f32.mrf.mxu0
      %v1838 = vadd.f32 0.0, %v1837
      %v1839 = vpop.f32.mrf.mxu0
      %v1840 = vadd.f32 0.0, %v1839
      %1841 = vmatmul.bf16.gmra.mxu0 %v1320
      %v1842 = vpop.f32.mrf.mxu0
      %v1843 = vadd.f32 0.0, %v1842
      %v1844 = vpop.f32.mrf.mxu0
      %v1845 = vadd.f32 0.0, %v1844
      %1846 = vmatmul.bf16.gmra.mxu0 %v1323
      %v1847 = vpop.f32.mrf.mxu0
      %v1848 = vadd.f32 0.0, %v1847
      %v1849 = vpop.f32.mrf.mxu0
      %v1850 = vadd.f32 0.0, %v1849
      %1851 = vmatmul.bf16.gmra.mxu0 %v1326
      %v1852 = vpop.f32.mrf.mxu0
      %v1853 = vadd.f32 0.0, %v1852
      %v1854 = vpop.f32.mrf.mxu0
      %v1855 = vadd.f32 0.0, %v1854
      %1856 = vmatmul.bf16.gmra.mxu0 %v1329
      %v1857 = vpop.f32.mrf.mxu0
      %v1858 = vadd.f32 0.0, %v1857
      %v1859 = vpop.f32.mrf.mxu0
      %v1860 = vadd.f32 0.0, %v1859
      %1861 = vmatmul.bf16.gmra.mxu0 %v1332
      %v1862 = vpop.f32.mrf.mxu0
      %v1863 = vadd.f32 0.0, %v1862
      %v1864 = vpop.f32.mrf.mxu0
      %v1865 = vadd.f32 0.0, %v1864
      %1866 = vmatmul.bf16.gmra.mxu0 %v1335
      %v1867 = vpop.f32.mrf.mxu0
      %v1868 = vadd.f32 0.0, %v1867
      %v1869 = vpop.f32.mrf.mxu0
      %v1870 = vadd.f32 0.0, %v1869
      %1871 = vmatmul.bf16.gmra.mxu0 %v1338
      %v1872 = vpop.f32.mrf.mxu0
      %v1873 = vadd.f32 0.0, %v1872
      %v1874 = vpop.f32.mrf.mxu0
      %v1875 = vadd.f32 0.0, %v1874
      %1876 = vmatmul.bf16.gmra.mxu0 %v1341
      %v1877 = vpop.f32.mrf.mxu0
      %v1878 = vadd.f32 0.0, %v1877
      %v1879 = vpop.f32.mrf.mxu0
      %v1880 = vadd.f32 0.0, %v1879
      %1881 = vmatmul.bf16.gmra.mxu0 %v1344
      %v1882 = vpop.f32.mrf.mxu0
      %v1883 = vadd.f32 0.0, %v1882
      %v1884 = vpop.f32.mrf.mxu0
      %v1885 = vadd.f32 0.0, %v1884
      %1886 = vmatmul.bf16.gmra.mxu0 %v1347
      %v1887 = vpop.f32.mrf.mxu0
      %v1888 = vadd.f32 0.0, %v1887
      %v1889 = vpop.f32.mrf.mxu0
      %v1890 = vadd.f32 0.0, %v1889
      %1891 = vmatmul.bf16.gmra.mxu0 %v1350
      %v1892 = vpop.f32.mrf.mxu0
      %v1893 = vadd.f32 0.0, %v1892
      %v1894 = vpop.f32.mrf.mxu0
      %v1895 = vadd.f32 0.0, %v1894
      %1896 = vmatmul.bf16.gmra.mxu0 %v1353
      %v1897 = vpop.f32.mrf.mxu0
      %v1898 = vadd.f32 0.0, %v1897
      %v1899 = vpop.f32.mrf.mxu0
      %v1900 = vadd.f32 0.0, %v1899
      %1901 = vmatmul.bf16.gmra.mxu0 %v1356
      %v1902 = vpop.f32.mrf.mxu0
      %v1903 = vadd.f32 0.0, %v1902
      %v1904 = vpop.f32.mrf.mxu0
      %v1905 = vadd.f32 0.0, %v1904
      %1906 = vmatmul.bf16.gmra.mxu0 %v1359
      %v1907 = vpop.f32.mrf.mxu0
      %v1908 = vadd.f32 0.0, %v1907
      %v1909 = vpop.f32.mrf.mxu0
      %v1910 = vadd.f32 0.0, %v1909
      %1911 = vmatmul.bf16.gmra.mxu0 %v1362
      %v1912 = vpop.f32.mrf.mxu0
      %v1913 = vadd.f32 0.0, %v1912
      %v1914 = vpop.f32.mrf.mxu0
      %v1915 = vadd.f32 0.0, %v1914
      %1916 = vmatmul.bf16.gmra.mxu0 %v1365
      %v1917 = vpop.f32.mrf.mxu0
      %v1918 = vadd.f32 0.0, %v1917
      %v1919 = vpop.f32.mrf.mxu0
      %v1920 = vadd.f32 0.0, %v1919
      %1921 = vmatmul.bf16.gmra.mxu0 %v1368
      %v1922 = vpop.f32.mrf.mxu0
      %v1923 = vadd.f32 0.0, %v1922
      %v1924 = vpop.f32.mrf.mxu0
      %v1925 = vadd.f32 0.0, %v1924
      %1926 = vmatmul.bf16.gmra.mxu0 %v1371
      %v1927 = vpop.f32.mrf.mxu0
      %v1928 = vadd.f32 0.0, %v1927
      %v1929 = vpop.f32.mrf.mxu0
      %v1930 = vadd.f32 0.0, %v1929
      %1931 = vmatmul.bf16.gmra.mxu0 %v1374
      %v1932 = vpop.f32.mrf.mxu0
      %v1933 = vadd.f32 0.0, %v1932
      %v1934 = vpop.f32.mrf.mxu0
      %v1935 = vadd.f32 0.0, %v1934
      %1936 = vmatmul.bf16.gmra.mxu0 %v1377
      %v1937 = vpop.f32.mrf.mxu0
      %v1938 = vadd.f32 0.0, %v1937
      %v1939 = vpop.f32.mrf.mxu0
      %v1940 = vadd.f32 0.0, %v1939
      %1941 = vmatmul.bf16.gmra.mxu0 %v1380
      %v1942 = vpop.f32.mrf.mxu0
      %v1943 = vadd.f32 0.0, %v1942
      %v1944 = vpop.f32.mrf.mxu0
      %v1945 = vadd.f32 0.0, %v1944
      %1946 = vmatmul.bf16.gmra.mxu0 %v1383
      %v1947 = vpop.f32.mrf.mxu0
      %v1948 = vadd.f32 0.0, %v1947
      %v1949 = vpop.f32.mrf.mxu0
      %v1950 = vadd.f32 0.0, %v1949
      %1951 = vmatmul.bf16.gmra.mxu0 %v1386
      %v1952 = vpop.f32.mrf.mxu0
      %v1953 = vadd.f32 0.0, %v1952
      %v1954 = vpop.f32.mrf.mxu0
      %v1955 = vadd.f32 0.0, %v1954
      %1956 = vmatmul.bf16.gmra.mxu0 %v1389
      %v1957 = vpop.f32.mrf.mxu0
      %v1958 = vadd.f32 0.0, %v1957
      %v1959 = vpop.f32.mrf.mxu0
      %v1960 = vadd.f32 0.0, %v1959
      %1961 = vmatmul.bf16.gmra.mxu0 %v1392
      %v1962 = vpop.f32.mrf.mxu0
      %v1963 = vadd.f32 0.0, %v1962
      %v1964 = vpop.f32.mrf.mxu0
      %v1965 = vadd.f32 0.0, %v1964
      %1966 = vmatmul.bf16.gmra.mxu0 %v1395
      %v1967 = vpop.f32.mrf.mxu0
      %v1968 = vadd.f32 0.0, %v1967
      %v1969 = vpop.f32.mrf.mxu0
      %v1970 = vadd.f32 0.0, %v1969
      %1971 = vmatmul.bf16.gmra.mxu0 %v1398
      %v1972 = vpop.f32.mrf.mxu0
      %v1973 = vadd.f32 0.0, %v1972
      %v1974 = vpop.f32.mrf.mxu0
      %v1975 = vadd.f32 0.0, %v1974
      %1976 = vmatmul.bf16.gmra.mxu0 %v1401
      %v1977 = vpop.f32.mrf.mxu0
      %v1978 = vadd.f32 0.0, %v1977
      %v1979 = vpop.f32.mrf.mxu0
      %v1980 = vadd.f32 0.0, %v1979
      %1981 = vmatmul.bf16.gmra.mxu0 %v1404
      %v1982 = vpop.f32.mrf.mxu0
      %v1983 = vadd.f32 0.0, %v1982
      %v1984 = vpop.f32.mrf.mxu0
      %v1985 = vadd.f32 0.0, %v1984
      %1986 = vmatmul.bf16.gmra.mxu0 %v1407
      %v1987 = vpop.f32.mrf.mxu0
      %v1988 = vadd.f32 0.0, %v1987
      %v1989 = vpop.f32.mrf.mxu0
      %v1990 = vadd.f32 0.0, %v1989
      %1991 = vmatmul.bf16.gmra.mxu0 %v1410
      %v1992 = vpop.f32.mrf.mxu0
      %v1993 = vadd.f32 0.0, %v1992
      %v1994 = vpop.f32.mrf.mxu0
      %v1995 = vadd.f32 0.0, %v1994
      %1996 = vmatmul.bf16.gmra.mxu0 %v1413
      %v1997 = vpop.f32.mrf.mxu0
      %v1998 = vadd.f32 0.0, %v1997
      %v1999 = vpop.f32.mrf.mxu0
      %v2000 = vadd.f32 0.0, %v1999
      %2001 = vmatmul.bf16.gmra.mxu0 %v1416
      %v2002 = vpop.f32.mrf.mxu0
      %v2003 = vadd.f32 0.0, %v2002
      %v2004 = vpop.f32.mrf.mxu0
      %v2005 = vadd.f32 0.0, %v2004
      %2006 = vmatmul.bf16.gmra.mxu0 %v1419
      %v2007 = vpop.f32.mrf.mxu0
      %v2008 = vadd.f32 0.0, %v2007
      %v2009 = vpop.f32.mrf.mxu0
      %v2010 = vadd.f32 0.0, %v2009
      %2011 = vmatmul.bf16.gmra.mxu0 %v1422
      %v2012 = vpop.f32.mrf.mxu0
      %v2013 = vadd.f32 0.0, %v2012
      %v2014 = vpop.f32.mrf.mxu0
      %v2015 = vadd.f32 0.0, %v2014
      %2016 = vmatmul.bf16.gmra.mxu0 %v1425
      %v2017 = vpop.f32.mrf.mxu0
      %v2018 = vadd.f32 0.0, %v2017
      %v2019 = vpop.f32.mrf.mxu0
      %v2020 = vadd.f32 0.0, %v2019
      %2021 = vmatmul.bf16.gmra.mxu0 %v1428
      %v2022 = vpop.f32.mrf.mxu0
      %v2023 = vadd.f32 0.0, %v2022
      %v2024 = vpop.f32.mrf.mxu0
      %v2025 = vadd.f32 0.0, %v2024
      %2026 = vmatmul.bf16.gmra.mxu0 %v1431
      %v2027 = vpop.f32.mrf.mxu0
      %v2028 = vadd.f32 0.0, %v2027
      %v2029 = vpop.f32.mrf.mxu0
      %v2030 = vadd.f32 0.0, %v2029
      %2031 = vmatmul.bf16.gmra.mxu0 %v1434
      %v2032 = vpop.f32.mrf.mxu0
      %v2033 = vadd.f32 0.0, %v2032
      %v2034 = vpop.f32.mrf.mxu0
      %v2035 = vadd.f32 0.0, %v2034
      %2036 = vmatmul.bf16.gmra.mxu0 %v1437
      %v2037 = vpop.f32.mrf.mxu0
      %v2038 = vadd.f32 0.0, %v2037
      %v2039 = vpop.f32.mrf.mxu0
      %v2040 = vadd.f32 0.0, %v2039
      %2041 = vmatmul.bf16.gmra.mxu0 %v1440
      %v2042 = vpop.f32.mrf.mxu0
      %v2043 = vadd.f32 0.0, %v2042
      %v2044 = vpop.f32.mrf.mxu0
      %v2045 = vadd.f32 0.0, %v2044
      %2046 = vmatmul.bf16.gmra.mxu0 %v1443
      %v2047 = vpop.f32.mrf.mxu0
      %v2048 = vadd.f32 0.0, %v2047
      %v2049 = vpop.f32.mrf.mxu0
      %v2050 = vadd.f32 0.0, %v2049
      %2051 = vmatmul.bf16.gmra.mxu0 %v1446
      %v2052 = vpop.f32.mrf.mxu0
      %v2053 = vadd.f32 0.0, %v2052
      %v2054 = vpop.f32.mrf.mxu0
      %v2055 = vadd.f32 0.0, %v2054
      %2056 = vmatmul.bf16.gmra.mxu0 %v1449
      %v2057 = vpop.f32.mrf.mxu0
      %v2058 = vadd.f32 0.0, %v2057
      %v2059 = vpop.f32.mrf.mxu0
      %v2060 = vadd.f32 0.0, %v2059
      %2061 = vmatmul.bf16.gmra.mxu0 %v1452
      %v2062 = vpop.f32.mrf.mxu0
      %v2063 = vadd.f32 0.0, %v2062
      %v2064 = vpop.f32.mrf.mxu0
      %v2065 = vadd.f32 0.0, %v2064
      %2066 = vmatmul.bf16.gmra.mxu0 %v1455
      %v2067 = vpop.f32.mrf.mxu0
      %v2068 = vadd.f32 0.0, %v2067
      %v2069 = vpop.f32.mrf.mxu0
      %v2070 = vadd.f32 0.0, %v2069
      %2071 = vmatmul.bf16.gmra.mxu0 %v1458
      %v2072 = vpop.f32.mrf.mxu0
      %v2073 = vadd.f32 0.0, %v2072
      %v2074 = vpop.f32.mrf.mxu0
      %v2075 = vadd.f32 0.0, %v2074
      %2076 = vmatmul.bf16.gmra.mxu0 %v1461
      %v2077 = vpop.f32.mrf.mxu0
      %v2078 = vadd.f32 0.0, %v2077
      %v2079 = vpop.f32.mrf.mxu0
      %v2080 = vadd.f32 0.0, %v2079
      %2081 = vmatmul.bf16.gmra.mxu0 %v1464
      %v2082 = vpop.f32.mrf.mxu0
      %v2083 = vadd.f32 0.0, %v2082
      %v2084 = vpop.f32.mrf.mxu0
      %v2085 = vadd.f32 0.0, %v2084
      %2086 = vmatmul.bf16.gmra.mxu0 %v1467
      %v2087 = vpop.f32.mrf.mxu0
      %v2088 = vadd.f32 0.0, %v2087
      %v2089 = vpop.f32.mrf.mxu0
      %v2090 = vadd.f32 0.0, %v2089
      %2091 = vmatmul.bf16.gmra.mxu0 %v1470
      %v2092 = vpop.f32.mrf.mxu0
      %v2093 = vadd.f32 0.0, %v2092
      %v2094 = vpop.f32.mrf.mxu0
      %v2095 = vadd.f32 0.0, %v2094
      %2096 = vmatmul.bf16.gmra.mxu0 %v1473
      %v2097 = vpop.f32.mrf.mxu0
      %v2098 = vadd.f32 0.0, %v2097
      %v2099 = vpop.f32.mrf.mxu0
      %v2100 = vadd.f32 0.0, %v2099
      %2101 = vmatmul.bf16.gmra.mxu0 %v1476
      %v2102 = vpop.f32.mrf.mxu0
      %v2103 = vadd.f32 0.0, %v2102
      %v2104 = vpop.f32.mrf.mxu0
      %v2105 = vadd.f32 0.0, %v2104
      %2106 = vmatmul.bf16.gmra.mxu0 %v1479
      %v2107 = vpop.f32.mrf.mxu0
      %v2108 = vadd.f32 0.0, %v2107
      %v2109 = vpop.f32.mrf.mxu0
      %v2110 = vadd.f32 0.0, %v2109
      %2111 = vmatmul.bf16.gmra.mxu0 %v1482
      %v2112 = vpop.f32.mrf.mxu0
      %v2113 = vadd.f32 0.0, %v2112
      %v2114 = vpop.f32.mrf.mxu0
      %v2115 = vadd.f32 0.0, %v2114
      %2116 = vmatmul.bf16.gmra.mxu0 %v1485
      %v2117 = vpop.f32.mrf.mxu0
      %v2118 = vadd.f32 0.0, %v2117
      %v2119 = vpop.f32.mrf.mxu0
      %v2120 = vadd.f32 0.0, %v2119
      %2121 = vmatmul.bf16.gmra.mxu0 %v1488
      %v2122 = vpop.f32.mrf.mxu0
      %v2123 = vadd.f32 0.0, %v2122
      %v2124 = vpop.f32.mrf.mxu0
      %v2125 = vadd.f32 0.0, %v2124
      %2126 = vmatmul.bf16.gmra.mxu0 %v1491
      %v2127 = vpop.f32.mrf.mxu0
      %v2128 = vadd.f32 0.0, %v2127
      %v2129 = vpop.f32.mrf.mxu0
      %v2130 = vadd.f32 0.0, %v2129
      %2131 = vmatmul.bf16.gmra.mxu0 %v1494
      %v2132 = vpop.f32.mrf.mxu0
      %v2133 = vadd.f32 0.0, %v2132
      %v2134 = vpop.f32.mrf.mxu0
      %v2135 = vadd.f32 0.0, %v2134
      %2136 = vmatmul.bf16.gmra.mxu0 %v1497
      %v2137 = vpop.f32.mrf.mxu0
      %v2138 = vadd.f32 0.0, %v2137
      %v2139 = vpop.f32.mrf.mxu0
      %v2140 = vadd.f32 0.0, %v2139
      %2141 = vmatmul.bf16.gmra.mxu0 %v1500
      %v2142 = vpop.f32.mrf.mxu0
      %v2143 = vadd.f32 0.0, %v2142
      %v2144 = vpop.f32.mrf.mxu0
      %v2145 = vadd.f32 0.0, %v2144
      %2146 = vmatmul.bf16.gmra.mxu0 %v1503
      %v2147 = vpop.f32.mrf.mxu0
      %v2148 = vadd.f32 0.0, %v2147
      %v2149 = vpop.f32.mrf.mxu0
      %v2150 = vadd.f32 0.0, %v2149
      %2151 = vmatmul.bf16.gmra.mxu0 %v1506
      %v2152 = vpop.f32.mrf.mxu0
      %v2153 = vadd.f32 0.0, %v2152
      %v2154 = vpop.f32.mrf.mxu0
      %v2155 = vadd.f32 0.0, %v2154
      %2156 = vdwg.mxu0
      %v2157 = vpack.c.bf16 %v1518, %v1518
      %v2158 = vpack.c.bf16 %v1520, %v1520
      %v2159 = vpack.c.bf16 %v1523, %v1523
      %v2160 = vpack.c.bf16 %v1525, %v1525
      %v2161 = vpack.c.bf16 %v1528, %v1528
      %v2162 = vpack.c.bf16 %v1530, %v1530
      %v2163 = vpack.c.bf16 %v1533, %v1533
      %v2164 = vpack.c.bf16 %v1535, %v1535
      %v2165 = vpack.c.bf16 %v1538, %v1538
      %v2166 = vpack.c.bf16 %v1540, %v1540
      %v2167 = vpack.c.bf16 %v1543, %v1543
      %v2168 = vpack.c.bf16 %v1545, %v1545
      %v2169 = vpack.c.bf16 %v1548, %v1548
      %v2170 = vpack.c.bf16 %v1550, %v1550
      %v2171 = vpack.c.bf16 %v1553, %v1553
      %v2172 = vpack.c.bf16 %v1555, %v1555
      %v2173 = vpack.c.bf16 %v1558, %v1558
      %v2174 = vpack.c.bf16 %v1560, %v1560
      %v2175 = vpack.c.bf16 %v1563, %v1563
      %v2176 = vpack.c.bf16 %v1565, %v1565
      %v2177 = vpack.c.bf16 %v1568, %v1568
      %v2178 = vpack.c.bf16 %v1570, %v1570
      %v2179 = vpack.c.bf16 %v1573, %v1573
      %v2180 = vpack.c.bf16 %v1575, %v1575
      %v2181 = vpack.c.bf16 %v1578, %v1578
      %v2182 = vpack.c.bf16 %v1580, %v1580
      %v2183 = vpack.c.bf16 %v1583, %v1583
      %v2184 = vpack.c.bf16 %v1585, %v1585
      %v2185 = vpack.c.bf16 %v1588, %v1588
      %v2186 = vpack.c.bf16 %v1590, %v1590
      %v2187 = vpack.c.bf16 %v1593, %v1593
      %v2188 = vpack.c.bf16 %v1595, %v1595
      %v2189 = vpack.c.bf16 %v1598, %v1598
      %v2190 = vpack.c.bf16 %v1600, %v1600
      %v2191 = vpack.c.bf16 %v1603, %v1603
      %v2192 = vpack.c.bf16 %v1605, %v1605
      %v2193 = vpack.c.bf16 %v1608, %v1608
      %v2194 = vpack.c.bf16 %v1610, %v1610
      %v2195 = vpack.c.bf16 %v1613, %v1613
      %v2196 = vpack.c.bf16 %v1615, %v1615
      %v2197 = vpack.c.bf16 %v1618, %v1618
      %v2198 = vpack.c.bf16 %v1620, %v1620
      %v2199 = vpack.c.bf16 %v1623, %v1623
      %v2200 = vpack.c.bf16 %v1625, %v1625
      %v2201 = vpack.c.bf16 %v1628, %v1628
      %v2202 = vpack.c.bf16 %v1630, %v1630
      %v2203 = vpack.c.bf16 %v1633, %v1633
      %v2204 = vpack.c.bf16 %v1635, %v1635
      %v2205 = vpack.c.bf16 %v1638, %v1638
      %v2206 = vpack.c.bf16 %v1640, %v1640
      %v2207 = vpack.c.bf16 %v1643, %v1643
      %v2208 = vpack.c.bf16 %v1645, %v1645
      %v2209 = vpack.c.bf16 %v1648, %v1648
      %v2210 = vpack.c.bf16 %v1650, %v1650
      %v2211 = vpack.c.bf16 %v1653, %v1653
      %v2212 = vpack.c.bf16 %v1655, %v1655
      %v2213 = vpack.c.bf16 %v1658, %v1658
      %v2214 = vpack.c.bf16 %v1660, %v1660
      %v2215 = vpack.c.bf16 %v1663, %v1663
      %v2216 = vpack.c.bf16 %v1665, %v1665
      %v2217 = vpack.c.bf16 %v1668, %v1668
      %v2218 = vpack.c.bf16 %v1670, %v1670
      %v2219 = vpack.c.bf16 %v1673, %v1673
      %v2220 = vpack.c.bf16 %v1675, %v1675
      %v2221 = vpack.c.bf16 %v1678, %v1678
      %v2222 = vpack.c.bf16 %v1680, %v1680
      %v2223 = vpack.c.bf16 %v1683, %v1683
      %v2224 = vpack.c.bf16 %v1685, %v1685
      %v2225 = vpack.c.bf16 %v1688, %v1688
      %v2226 = vpack.c.bf16 %v1690, %v1690
      %v2227 = vpack.c.bf16 %v1693, %v1693
      %v2228 = vpack.c.bf16 %v1695, %v1695
      %v2229 = vpack.c.bf16 %v1698, %v1698
      %v2230 = vpack.c.bf16 %v1700, %v1700
      %v2231 = vpack.c.bf16 %v1703, %v1703
      %v2232 = vpack.c.bf16 %v1705, %v1705
      %v2233 = vpack.c.bf16 %v1708, %v1708
      %v2234 = vpack.c.bf16 %v1710, %v1710
      %v2235 = vpack.c.bf16 %v1713, %v1713
      %v2236 = vpack.c.bf16 %v1715, %v1715
      %v2237 = vpack.c.bf16 %v1718, %v1718
      %v2238 = vpack.c.bf16 %v1720, %v1720
      %v2239 = vpack.c.bf16 %v1723, %v1723
      %v2240 = vpack.c.bf16 %v1725, %v1725
      %v2241 = vpack.c.bf16 %v1728, %v1728
      %v2242 = vpack.c.bf16 %v1730, %v1730
      %v2243 = vpack.c.bf16 %v1733, %v1733
      %v2244 = vpack.c.bf16 %v1735, %v1735
      %v2245 = vpack.c.bf16 %v1738, %v1738
      %v2246 = vpack.c.bf16 %v1740, %v1740
      %v2247 = vpack.c.bf16 %v1743, %v1743
      %v2248 = vpack.c.bf16 %v1745, %v1745
      %v2249 = vpack.c.bf16 %v1748, %v1748
      %v2250 = vpack.c.bf16 %v1750, %v1750
      %v2251 = vpack.c.bf16 %v1753, %v1753
      %v2252 = vpack.c.bf16 %v1755, %v1755
      %v2253 = vpack.c.bf16 %v1758, %v1758
      %v2254 = vpack.c.bf16 %v1760, %v1760
      %v2255 = vpack.c.bf16 %v1763, %v1763
      %v2256 = vpack.c.bf16 %v1765, %v1765
      %v2257 = vpack.c.bf16 %v1768, %v1768
      %v2258 = vpack.c.bf16 %v1770, %v1770
      %v2259 = vpack.c.bf16 %v1773, %v1773
      %v2260 = vpack.c.bf16 %v1775, %v1775
      %v2261 = vpack.c.bf16 %v1778, %v1778
      %v2262 = vpack.c.bf16 %v1780, %v1780
      %v2263 = vpack.c.bf16 %v1783, %v1783
      %v2264 = vpack.c.bf16 %v1785, %v1785
      %v2265 = vpack.c.bf16 %v1788, %v1788
      %v2266 = vpack.c.bf16 %v1790, %v1790
      %v2267 = vpack.c.bf16 %v1793, %v1793
      %v2268 = vpack.c.bf16 %v1795, %v1795
      %v2269 = vpack.c.bf16 %v1798, %v1798
      %v2270 = vpack.c.bf16 %v1800, %v1800
      %v2271 = vpack.c.bf16 %v1803, %v1803
      %v2272 = vpack.c.bf16 %v1805, %v1805
      %v2273 = vpack.c.bf16 %v1808, %v1808
      %v2274 = vpack.c.bf16 %v1810, %v1810
      %v2275 = vpack.c.bf16 %v1813, %v1813
      %v2276 = vpack.c.bf16 %v1815, %v1815
      %v2277 = vpack.c.bf16 %v1818, %v1818
      %v2278 = vpack.c.bf16 %v1820, %v1820
      %v2279 = vpack.c.bf16 %v1823, %v1823
      %v2280 = vpack.c.bf16 %v1825, %v1825
      %v2281 = vpack.c.bf16 %v1828, %v1828
      %v2282 = vpack.c.bf16 %v1830, %v1830
      %v2283 = vpack.c.bf16 %v1833, %v1833
      %v2284 = vpack.c.bf16 %v1835, %v1835
      %v2285 = vpack.c.bf16 %v1838, %v1838
      %v2286 = vpack.c.bf16 %v1840, %v1840
      %v2287 = vpack.c.bf16 %v1843, %v1843
      %v2288 = vpack.c.bf16 %v1845, %v1845
      %v2289 = vpack.c.bf16 %v1848, %v1848
      %v2290 = vpack.c.bf16 %v1850, %v1850
      %v2291 = vpack.c.bf16 %v1853, %v1853
      %v2292 = vpack.c.bf16 %v1855, %v1855
      %v2293 = vpack.c.bf16 %v1858, %v1858
      %v2294 = vpack.c.bf16 %v1860, %v1860
      %v2295 = vpack.c.bf16 %v1863, %v1863
      %v2296 = vpack.c.bf16 %v1865, %v1865
      %v2297 = vpack.c.bf16 %v1868, %v1868
      %v2298 = vpack.c.bf16 %v1870, %v1870
      %v2299 = vpack.c.bf16 %v1873, %v1873
      %v2300 = vpack.c.bf16 %v1875, %v1875
      %v2301 = vpack.c.bf16 %v1878, %v1878
      %v2302 = vpack.c.bf16 %v1880, %v1880
      %v2303 = vpack.c.bf16 %v1883, %v1883
      %v2304 = vpack.c.bf16 %v1885, %v1885
      %v2305 = vpack.c.bf16 %v1888, %v1888
      %v2306 = vpack.c.bf16 %v1890, %v1890
      %v2307 = vpack.c.bf16 %v1893, %v1893
      %v2308 = vpack.c.bf16 %v1895, %v1895
      %v2309 = vpack.c.bf16 %v1898, %v1898
      %v2310 = vpack.c.bf16 %v1900, %v1900
      %v2311 = vpack.c.bf16 %v1903, %v1903
      %v2312 = vpack.c.bf16 %v1905, %v1905
      %v2313 = vpack.c.bf16 %v1908, %v1908
      %v2314 = vpack.c.bf16 %v1910, %v1910
      %v2315 = vpack.c.bf16 %v1913, %v1913
      %v2316 = vpack.c.bf16 %v1915, %v1915
      %v2317 = vpack.c.bf16 %v1918, %v1918
      %v2318 = vpack.c.bf16 %v1920, %v1920
      %v2319 = vpack.c.bf16 %v1923, %v1923
      %v2320 = vpack.c.bf16 %v1925, %v1925
      %v2321 = vpack.c.bf16 %v1928, %v1928
      %v2322 = vpack.c.bf16 %v1930, %v1930
      %v2323 = vpack.c.bf16 %v1933, %v1933
      %v2324 = vpack.c.bf16 %v1935, %v1935
      %v2325 = vpack.c.bf16 %v1938, %v1938
      %v2326 = vpack.c.bf16 %v1940, %v1940
      %v2327 = vpack.c.bf16 %v1943, %v1943
      %v2328 = vpack.c.bf16 %v1945, %v1945
      %v2329 = vpack.c.bf16 %v1948, %v1948
      %v2330 = vpack.c.bf16 %v1950, %v1950
      %v2331 = vpack.c.bf16 %v1953, %v1953
      %v2332 = vpack.c.bf16 %v1955, %v1955
      %v2333 = vpack.c.bf16 %v1958, %v1958
      %v2334 = vpack.c.bf16 %v1960, %v1960
      %v2335 = vpack.c.bf16 %v1963, %v1963
      %v2336 = vpack.c.bf16 %v1965, %v1965
      %v2337 = vpack.c.bf16 %v1968, %v1968
      %v2338 = vpack.c.bf16 %v1970, %v1970
      %v2339 = vpack.c.bf16 %v1973, %v1973
      %v2340 = vpack.c.bf16 %v1975, %v1975
      %v2341 = vpack.c.bf16 %v1978, %v1978
      %v2342 = vpack.c.bf16 %v1980, %v1980
      %v2343 = vpack.c.bf16 %v1983, %v1983
      %v2344 = vpack.c.bf16 %v1985, %v1985
      %v2345 = vpack.c.bf16 %v1988, %v1988
      %v2346 = vpack.c.bf16 %v1990, %v1990
      %v2347 = vpack.c.bf16 %v1993, %v1993
      %v2348 = vpack.c.bf16 %v1995, %v1995
      %v2349 = vpack.c.bf16 %v1998, %v1998
      %v2350 = vpack.c.bf16 %v2000, %v2000
      %v2351 = vpack.c.bf16 %v2003, %v2003
      %v2352 = vpack.c.bf16 %v2005, %v2005
      %v2353 = vpack.c.bf16 %v2008, %v2008
      %v2354 = vpack.c.bf16 %v2010, %v2010
      %v2355 = vpack.c.bf16 %v2013, %v2013
      %v2356 = vpack.c.bf16 %v2015, %v2015
      %v2357 = vpack.c.bf16 %v2018, %v2018
      %v2358 = vpack.c.bf16 %v2020, %v2020
      %v2359 = vpack.c.bf16 %v2023, %v2023
      %v2360 = vpack.c.bf16 %v2025, %v2025
      %v2361 = vpack.c.bf16 %v2028, %v2028
      %v2362 = vpack.c.bf16 %v2030, %v2030
      %v2363 = vpack.c.bf16 %v2033, %v2033
      %v2364 = vpack.c.bf16 %v2035, %v2035
      %v2365 = vpack.c.bf16 %v2038, %v2038
      %v2366 = vpack.c.bf16 %v2040, %v2040
      %v2367 = vpack.c.bf16 %v2043, %v2043
      %v2368 = vpack.c.bf16 %v2045, %v2045
      %v2369 = vpack.c.bf16 %v2048, %v2048
      %v2370 = vpack.c.bf16 %v2050, %v2050
      %v2371 = vpack.c.bf16 %v2053, %v2053
      %v2372 = vpack.c.bf16 %v2055, %v2055
      %v2373 = vpack.c.bf16 %v2058, %v2058
      %v2374 = vpack.c.bf16 %v2060, %v2060
      %v2375 = vpack.c.bf16 %v2063, %v2063
      %v2376 = vpack.c.bf16 %v2065, %v2065
      %v2377 = vpack.c.bf16 %v2068, %v2068
      %v2378 = vpack.c.bf16 %v2070, %v2070
      %v2379 = vpack.c.bf16 %v2073, %v2073
      %v2380 = vpack.c.bf16 %v2075, %v2075
      %v2381 = vpack.c.bf16 %v2078, %v2078
      %v2382 = vpack.c.bf16 %v2080, %v2080
      %v2383 = vpack.c.bf16 %v2083, %v2083
      %v2384 = vpack.c.bf16 %v2085, %v2085
      %v2385 = vpack.c.bf16 %v2088, %v2088
      %v2386 = vpack.c.bf16 %v2090, %v2090
      %v2387 = vpack.c.bf16 %v2093, %v2093
      %v2388 = vpack.c.bf16 %v2095, %v2095
      %v2389 = vpack.c.bf16 %v2098, %v2098
      %v2390 = vpack.c.bf16 %v2100, %v2100
      %v2391 = vpack.c.bf16 %v2103, %v2103
      %v2392 = vpack.c.bf16 %v2105, %v2105
      %v2393 = vpack.c.bf16 %v2108, %v2108
      %v2394 = vpack.c.bf16 %v2110, %v2110
      %v2395 = vpack.c.bf16 %v2113, %v2113
      %v2396 = vpack.c.bf16 %v2115, %v2115
      %v2397 = vpack.c.bf16 %v2118, %v2118
      %v2398 = vpack.c.bf16 %v2120, %v2120
      %v2399 = vpack.c.bf16 %v2123, %v2123
      %v2400 = vpack.c.bf16 %v2125, %v2125
      %v2401 = vpack.c.bf16 %v2128, %v2128
      %v2402 = vpack.c.bf16 %v2130, %v2130
      %v2403 = vpack.c.bf16 %v2133, %v2133
      %v2404 = vpack.c.bf16 %v2135, %v2135
      %v2405 = vpack.c.bf16 %v2138, %v2138
      %v2406 = vpack.c.bf16 %v2140, %v2140
      %v2407 = vpack.c.bf16 %v2143, %v2143
      %v2408 = vpack.c.bf16 %v2145, %v2145
      %v2409 = vpack.c.bf16 %v2148, %v2148
      %v2410 = vpack.c.bf16 %v2150, %v2150
      %v2411 = vpack.c.bf16 %v2153, %v2153
      %v2412 = vpack.c.bf16 %v2155, %v2155
      %vm2413 = vcmask 519168
      %2414 = vst.msk [vmem:[%s216] sm:$0xf] %vm2413, %v2157
      %2415 = vst.msk [vmem:[%s216 + $0x4] sm:$0xf] %vm2413, %v2158
      %2416 = vst.msk [vmem:[%s216 + $0x8] sm:$0xf] %vm2413, %v2159
      %2417 = vst.msk [vmem:[%s216 + $0xc] sm:$0xf] %vm2413, %v2160
      %2418 = vst.msk [vmem:[%s216 + $0x10] sm:$0xf] %vm2413, %v2161
      %2419 = vst.msk [vmem:[%s216 + $0x14] sm:$0xf] %vm2413, %v2162
      %2420 = vst.msk [vmem:[%s216 + $0x18] sm:$0xf] %vm2413, %v2163
      %2421 = vst.msk [vmem:[%s216 + $0x1c] sm:$0xf] %vm2413, %v2164
      %2422 = vst.msk [vmem:[%s216 + $0x20] sm:$0xf] %vm2413, %v2165
      %2423 = vst.msk [vmem:[%s216 + $0x24] sm:$0xf] %vm2413, %v2166
      %2424 = vst.msk [vmem:[%s216 + $0x28] sm:$0xf] %vm2413, %v2167
      %2425 = vst.msk [vmem:[%s216 + $0x2c] sm:$0xf] %vm2413, %v2168
      %2426 = vst.msk [vmem:[%s216 + $0x30] sm:$0xf] %vm2413, %v2169
      %2427 = vst.msk [vmem:[%s216 + $0x34] sm:$0xf] %vm2413, %v2170
      %2428 = vst.msk [vmem:[%s216 + $0x38] sm:$0xf] %vm2413, %v2171
      %2429 = vst.msk [vmem:[%s216 + $0x3c] sm:$0xf] %vm2413, %v2172
      %2430 = vst.msk [vmem:[%s216 + $0x40] sm:$0xf] %vm2413, %v2173
      %2431 = vst.msk [vmem:[%s216 + $0x44] sm:$0xf] %vm2413, %v2174
      %2432 = vst.msk [vmem:[%s216 + $0x48] sm:$0xf] %vm2413, %v2175
      %2433 = vst.msk [vmem:[%s216 + $0x4c] sm:$0xf] %vm2413, %v2176
      %2434 = vst.msk [vmem:[%s216 + $0x50] sm:$0xf] %vm2413, %v2177
      %2435 = vst.msk [vmem:[%s216 + $0x54] sm:$0xf] %vm2413, %v2178
      %2436 = vst.msk [vmem:[%s216 + $0x58] sm:$0xf] %vm2413, %v2179
      %2437 = vst.msk [vmem:[%s216 + $0x5c] sm:$0xf] %vm2413, %v2180
      %2438 = vst.msk [vmem:[%s216 + $0x60] sm:$0xf] %vm2413, %v2181
      %2439 = vst.msk [vmem:[%s216 + $0x64] sm:$0xf] %vm2413, %v2182
      %2440 = vst.msk [vmem:[%s216 + $0x68] sm:$0xf] %vm2413, %v2183
      %2441 = vst.msk [vmem:[%s216 + $0x6c] sm:$0xf] %vm2413, %v2184
      %2442 = vst.msk [vmem:[%s216 + $0x70] sm:$0xf] %vm2413, %v2185
      %2443 = vst.msk [vmem:[%s216 + $0x74] sm:$0xf] %vm2413, %v2186
      %2444 = vst.msk [vmem:[%s216 + $0x78] sm:$0xf] %vm2413, %v2187
      %2445 = vst.msk [vmem:[%s216 + $0x7c] sm:$0xf] %vm2413, %v2188
      %2446 = vst.msk [vmem:[%s216 + $0x80] sm:$0xf] %vm2413, %v2189
      %2447 = vst.msk [vmem:[%s216 + $0x84] sm:$0xf] %vm2413, %v2190
      %2448 = vst.msk [vmem:[%s216 + $0x88] sm:$0xf] %vm2413, %v2191
      %2449 = vst.msk [vmem:[%s216 + $0x8c] sm:$0xf] %vm2413, %v2192
      %2450 = vst.msk [vmem:[%s216 + $0x90] sm:$0xf] %vm2413, %v2193
      %2451 = vst.msk [vmem:[%s216 + $0x94] sm:$0xf] %vm2413, %v2194
      %2452 = vst.msk [vmem:[%s216 + $0x98] sm:$0xf] %vm2413, %v2195
      %2453 = vst.msk [vmem:[%s216 + $0x9c] sm:$0xf] %vm2413, %v2196
      %2454 = vst.msk [vmem:[%s216 + $0xa0] sm:$0xf] %vm2413, %v2197
      %2455 = vst.msk [vmem:[%s216 + $0xa4] sm:$0xf] %vm2413, %v2198
      %2456 = vst.msk [vmem:[%s216 + $0xa8] sm:$0xf] %vm2413, %v2199
      %2457 = vst.msk [vmem:[%s216 + $0xac] sm:$0xf] %vm2413, %v2200
      %2458 = vst.msk [vmem:[%s216 + $0xb0] sm:$0xf] %vm2413, %v2201
      %2459 = vst.msk [vmem:[%s216 + $0xb4] sm:$0xf] %vm2413, %v2202
      %2460 = vst.msk [vmem:[%s216 + $0xb8] sm:$0xf] %vm2413, %v2203
      %2461 = vst.msk [vmem:[%s216 + $0xbc] sm:$0xf] %vm2413, %v2204
      %2462 = vst.msk [vmem:[%s216 + $0xc0] sm:$0xf] %vm2413, %v2205
      %2463 = vst.msk [vmem:[%s216 + $0xc4] sm:$0xf] %vm2413, %v2206
      %2464 = vst.msk [vmem:[%s216 + $0xc8] sm:$0xf] %vm2413, %v2207
      %2465 = vst.msk [vmem:[%s216 + $0xcc] sm:$0xf] %vm2413, %v2208
      %2466 = vst.msk [vmem:[%s216 + $0xd0] sm:$0xf] %vm2413, %v2209
      %2467 = vst.msk [vmem:[%s216 + $0xd4] sm:$0xf] %vm2413, %v2210
      %2468 = vst.msk [vmem:[%s216 + $0xd8] sm:$0xf] %vm2413, %v2211
      %2469 = vst.msk [vmem:[%s216 + $0xdc] sm:$0xf] %vm2413, %v2212
      %2470 = vst.msk [vmem:[%s216 + $0xe0] sm:$0xf] %vm2413, %v2213
      %2471 = vst.msk [vmem:[%s216 + $0xe4] sm:$0xf] %vm2413, %v2214
      %2472 = vst.msk [vmem:[%s216 + $0xe8] sm:$0xf] %vm2413, %v2215
      %2473 = vst.msk [vmem:[%s216 + $0xec] sm:$0xf] %vm2413, %v2216
      %2474 = vst.msk [vmem:[%s216 + $0xf0] sm:$0xf] %vm2413, %v2217
      %2475 = vst.msk [vmem:[%s216 + $0xf4] sm:$0xf] %vm2413, %v2218
      %2476 = vst.msk [vmem:[%s216 + $0xf8] sm:$0xf] %vm2413, %v2219
      %2477 = vst.msk [vmem:[%s216 + $0xfc] sm:$0xf] %vm2413, %v2220
      %2478 = vst.msk [vmem:[%s216 + $0x100] sm:$0xf] %vm2413, %v2221
      %2479 = vst.msk [vmem:[%s216 + $0x104] sm:$0xf] %vm2413, %v2222
      %2480 = vst.msk [vmem:[%s216 + $0x108] sm:$0xf] %vm2413, %v2223
      %2481 = vst.msk [vmem:[%s216 + $0x10c] sm:$0xf] %vm2413, %v2224
      %2482 = vst.msk [vmem:[%s216 + $0x110] sm:$0xf] %vm2413, %v2225
      %2483 = vst.msk [vmem:[%s216 + $0x114] sm:$0xf] %vm2413, %v2226
      %2484 = vst.msk [vmem:[%s216 + $0x118] sm:$0xf] %vm2413, %v2227
      %2485 = vst.msk [vmem:[%s216 + $0x11c] sm:$0xf] %vm2413, %v2228
      %2486 = vst.msk [vmem:[%s216 + $0x120] sm:$0xf] %vm2413, %v2229
      %2487 = vst.msk [vmem:[%s216 + $0x124] sm:$0xf] %vm2413, %v2230
      %2488 = vst.msk [vmem:[%s216 + $0x128] sm:$0xf] %vm2413, %v2231
      %2489 = vst.msk [vmem:[%s216 + $0x12c] sm:$0xf] %vm2413, %v2232
      %2490 = vst.msk [vmem:[%s216 + $0x130] sm:$0xf] %vm2413, %v2233
      %2491 = vst.msk [vmem:[%s216 + $0x134] sm:$0xf] %vm2413, %v2234
      %2492 = vst.msk [vmem:[%s216 + $0x138] sm:$0xf] %vm2413, %v2235
      %2493 = vst.msk [vmem:[%s216 + $0x13c] sm:$0xf] %vm2413, %v2236
      %2494 = vst.msk [vmem:[%s216 + $0x140] sm:$0xf] %vm2413, %v2237
      %2495 = vst.msk [vmem:[%s216 + $0x144] sm:$0xf] %vm2413, %v2238
      %2496 = vst.msk [vmem:[%s216 + $0x148] sm:$0xf] %vm2413, %v2239
      %2497 = vst.msk [vmem:[%s216 + $0x14c] sm:$0xf] %vm2413, %v2240
      %2498 = vst.msk [vmem:[%s216 + $0x150] sm:$0xf] %vm2413, %v2241
      %2499 = vst.msk [vmem:[%s216 + $0x154] sm:$0xf] %vm2413, %v2242
      %2500 = vst.msk [vmem:[%s216 + $0x158] sm:$0xf] %vm2413, %v2243
      %2501 = vst.msk [vmem:[%s216 + $0x15c] sm:$0xf] %vm2413, %v2244
      %2502 = vst.msk [vmem:[%s216 + $0x160] sm:$0xf] %vm2413, %v2245
      %2503 = vst.msk [vmem:[%s216 + $0x164] sm:$0xf] %vm2413, %v2246
      %2504 = vst.msk [vmem:[%s216 + $0x168] sm:$0xf] %vm2413, %v2247
      %2505 = vst.msk [vmem:[%s216 + $0x16c] sm:$0xf] %vm2413, %v2248
      %2506 = vst.msk [vmem:[%s216 + $0x170] sm:$0xf] %vm2413, %v2249
      %2507 = vst.msk [vmem:[%s216 + $0x174] sm:$0xf] %vm2413, %v2250
      %2508 = vst.msk [vmem:[%s216 + $0x178] sm:$0xf] %vm2413, %v2251
      %2509 = vst.msk [vmem:[%s216 + $0x17c] sm:$0xf] %vm2413, %v2252
      %2510 = vst.msk [vmem:[%s216 + $0x180] sm:$0xf] %vm2413, %v2253
      %2511 = vst.msk [vmem:[%s216 + $0x184] sm:$0xf] %vm2413, %v2254
      %2512 = vst.msk [vmem:[%s216 + $0x188] sm:$0xf] %vm2413, %v2255
      %2513 = vst.msk [vmem:[%s216 + $0x18c] sm:$0xf] %vm2413, %v2256
      %2514 = vst.msk [vmem:[%s216 + $0x190] sm:$0xf] %vm2413, %v2257
      %2515 = vst.msk [vmem:[%s216 + $0x194] sm:$0xf] %vm2413, %v2258
      %2516 = vst.msk [vmem:[%s216 + $0x198] sm:$0xf] %vm2413, %v2259
      %2517 = vst.msk [vmem:[%s216 + $0x19c] sm:$0xf] %vm2413, %v2260
      %2518 = vst.msk [vmem:[%s216 + $0x1a0] sm:$0xf] %vm2413, %v2261
      %2519 = vst.msk [vmem:[%s216 + $0x1a4] sm:$0xf] %vm2413, %v2262
      %2520 = vst.msk [vmem:[%s216 + $0x1a8] sm:$0xf] %vm2413, %v2263
      %2521 = vst.msk [vmem:[%s216 + $0x1ac] sm:$0xf] %vm2413, %v2264
      %2522 = vst.msk [vmem:[%s216 + $0x1b0] sm:$0xf] %vm2413, %v2265
      %2523 = vst.msk [vmem:[%s216 + $0x1b4] sm:$0xf] %vm2413, %v2266
      %2524 = vst.msk [vmem:[%s216 + $0x1b8] sm:$0xf] %vm2413, %v2267
      %2525 = vst.msk [vmem:[%s216 + $0x1bc] sm:$0xf] %vm2413, %v2268
      %2526 = vst.msk [vmem:[%s216 + $0x1c0] sm:$0xf] %vm2413, %v2269
      %2527 = vst.msk [vmem:[%s216 + $0x1c4] sm:$0xf] %vm2413, %v2270
      %2528 = vst.msk [vmem:[%s216 + $0x1c8] sm:$0xf] %vm2413, %v2271
      %2529 = vst.msk [vmem:[%s216 + $0x1cc] sm:$0xf] %vm2413, %v2272
      %2530 = vst.msk [vmem:[%s216 + $0x1d0] sm:$0xf] %vm2413, %v2273
      %2531 = vst.msk [vmem:[%s216 + $0x1d4] sm:$0xf] %vm2413, %v2274
      %2532 = vst.msk [vmem:[%s216 + $0x1d8] sm:$0xf] %vm2413, %v2275
      %2533 = vst.msk [vmem:[%s216 + $0x1dc] sm:$0xf] %vm2413, %v2276
      %2534 = vst.msk [vmem:[%s216 + $0x1e0] sm:$0xf] %vm2413, %v2277
      %2535 = vst.msk [vmem:[%s216 + $0x1e4] sm:$0xf] %vm2413, %v2278
      %2536 = vst.msk [vmem:[%s216 + $0x1e8] sm:$0xf] %vm2413, %v2279
      %2537 = vst.msk [vmem:[%s216 + $0x1ec] sm:$0xf] %vm2413, %v2280
      %2538 = vst.msk [vmem:[%s216 + $0x1f0] sm:$0xf] %vm2413, %v2281
      %2539 = vst.msk [vmem:[%s216 + $0x1f4] sm:$0xf] %vm2413, %v2282
      %2540 = vst.msk [vmem:[%s216 + $0x1f8] sm:$0xf] %vm2413, %v2283
      %2541 = vst.msk [vmem:[%s216 + $0x1fc] sm:$0xf] %vm2413, %v2284
      %2542 = vst.msk [vmem:[%s216 + $0x200] sm:$0xf] %vm2413, %v2285
      %2543 = vst.msk [vmem:[%s216 + $0x204] sm:$0xf] %vm2413, %v2286
      %2544 = vst.msk [vmem:[%s216 + $0x208] sm:$0xf] %vm2413, %v2287
      %2545 = vst.msk [vmem:[%s216 + $0x20c] sm:$0xf] %vm2413, %v2288
      %2546 = vst.msk [vmem:[%s216 + $0x210] sm:$0xf] %vm2413, %v2289
      %2547 = vst.msk [vmem:[%s216 + $0x214] sm:$0xf] %vm2413, %v2290
      %2548 = vst.msk [vmem:[%s216 + $0x218] sm:$0xf] %vm2413, %v2291
      %2549 = vst.msk [vmem:[%s216 + $0x21c] sm:$0xf] %vm2413, %v2292
      %2550 = vst.msk [vmem:[%s216 + $0x220] sm:$0xf] %vm2413, %v2293
      %2551 = vst.msk [vmem:[%s216 + $0x224] sm:$0xf] %vm2413, %v2294
      %2552 = vst.msk [vmem:[%s216 + $0x228] sm:$0xf] %vm2413, %v2295
      %2553 = vst.msk [vmem:[%s216 + $0x22c] sm:$0xf] %vm2413, %v2296
      %2554 = vst.msk [vmem:[%s216 + $0x230] sm:$0xf] %vm2413, %v2297
      %2555 = vst.msk [vmem:[%s216 + $0x234] sm:$0xf] %vm2413, %v2298
      %2556 = vst.msk [vmem:[%s216 + $0x238] sm:$0xf] %vm2413, %v2299
      %2557 = vst.msk [vmem:[%s216 + $0x23c] sm:$0xf] %vm2413, %v2300
      %2558 = vst.msk [vmem:[%s216 + $0x240] sm:$0xf] %vm2413, %v2301
      %2559 = vst.msk [vmem:[%s216 + $0x244] sm:$0xf] %vm2413, %v2302
      %2560 = vst.msk [vmem:[%s216 + $0x248] sm:$0xf] %vm2413, %v2303
      %2561 = vst.msk [vmem:[%s216 + $0x24c] sm:$0xf] %vm2413, %v2304
      %2562 = vst.msk [vmem:[%s216 + $0x250] sm:$0xf] %vm2413, %v2305
      %2563 = vst.msk [vmem:[%s216 + $0x254] sm:$0xf] %vm2413, %v2306
      %2564 = vst.msk [vmem:[%s216 + $0x258] sm:$0xf] %vm2413, %v2307
      %2565 = vst.msk [vmem:[%s216 + $0x25c] sm:$0xf] %vm2413, %v2308
      %2566 = vst.msk [vmem:[%s216 + $0x260] sm:$0xf] %vm2413, %v2309
      %2567 = vst.msk [vmem:[%s216 + $0x264] sm:$0xf] %vm2413, %v2310
      %2568 = vst.msk [vmem:[%s216 + $0x268] sm:$0xf] %vm2413, %v2311
      %2569 = vst.msk [vmem:[%s216 + $0x26c] sm:$0xf] %vm2413, %v2312
      %2570 = vst.msk [vmem:[%s216 + $0x270] sm:$0xf] %vm2413, %v2313
      %2571 = vst.msk [vmem:[%s216 + $0x274] sm:$0xf] %vm2413, %v2314
      %2572 = vst.msk [vmem:[%s216 + $0x278] sm:$0xf] %vm2413, %v2315
      %2573 = vst.msk [vmem:[%s216 + $0x27c] sm:$0xf] %vm2413, %v2316
      %2574 = vst.msk [vmem:[%s216 + $0x280] sm:$0xf] %vm2413, %v2317
      %2575 = vst.msk [vmem:[%s216 + $0x284] sm:$0xf] %vm2413, %v2318
      %2576 = vst.msk [vmem:[%s216 + $0x288] sm:$0xf] %vm2413, %v2319
      %2577 = vst.msk [vmem:[%s216 + $0x28c] sm:$0xf] %vm2413, %v2320
      %2578 = vst.msk [vmem:[%s216 + $0x290] sm:$0xf] %vm2413, %v2321
      %2579 = vst.msk [vmem:[%s216 + $0x294] sm:$0xf] %vm2413, %v2322
      %2580 = vst.msk [vmem:[%s216 + $0x298] sm:$0xf] %vm2413, %v2323
      %2581 = vst.msk [vmem:[%s216 + $0x29c] sm:$0xf] %vm2413, %v2324
      %2582 = vst.msk [vmem:[%s216 + $0x2a0] sm:$0xf] %vm2413, %v2325
      %2583 = vst.msk [vmem:[%s216 + $0x2a4] sm:$0xf] %vm2413, %v2326
      %2584 = vst.msk [vmem:[%s216 + $0x2a8] sm:$0xf] %vm2413, %v2327
      %2585 = vst.msk [vmem:[%s216 + $0x2ac] sm:$0xf] %vm2413, %v2328
      %2586 = vst.msk [vmem:[%s216 + $0x2b0] sm:$0xf] %vm2413, %v2329
      %2587 = vst.msk [vmem:[%s216 + $0x2b4] sm:$0xf] %vm2413, %v2330
      %2588 = vst.msk [vmem:[%s216 + $0x2b8] sm:$0xf] %vm2413, %v2331
      %2589 = vst.msk [vmem:[%s216 + $0x2bc] sm:$0xf] %vm2413, %v2332
      %2590 = vst.msk [vmem:[%s216 + $0x2c0] sm:$0xf] %vm2413, %v2333
      %2591 = vst.msk [vmem:[%s216 + $0x2c4] sm:$0xf] %vm2413, %v2334
      %2592 = vst.msk [vmem:[%s216 + $0x2c8] sm:$0xf] %vm2413, %v2335
      %2593 = vst.msk [vmem:[%s216 + $0x2cc] sm:$0xf] %vm2413, %v2336
      %2594 = vst.msk [vmem:[%s216 + $0x2d0] sm:$0xf] %vm2413, %v2337
      %2595 = vst.msk [vmem:[%s216 + $0x2d4] sm:$0xf] %vm2413, %v2338
      %2596 = vst.msk [vmem:[%s216 + $0x2d8] sm:$0xf] %vm2413, %v2339
      %2597 = vst.msk [vmem:[%s216 + $0x2dc] sm:$0xf] %vm2413, %v2340
      %2598 = vst.msk [vmem:[%s216 + $0x2e0] sm:$0xf] %vm2413, %v2341
      %2599 = vst.msk [vmem:[%s216 + $0x2e4] sm:$0xf] %vm2413, %v2342
      %2600 = vst.msk [vmem:[%s216 + $0x2e8] sm:$0xf] %vm2413, %v2343
      %2601 = vst.msk [vmem:[%s216 + $0x2ec] sm:$0xf] %vm2413, %v2344
      %2602 = vst.msk [vmem:[%s216 + $0x2f0] sm:$0xf] %vm2413, %v2345
      %2603 = vst.msk [vmem:[%s216 + $0x2f4] sm:$0xf] %vm2413, %v2346
      %2604 = vst.msk [vmem:[%s216 + $0x2f8] sm:$0xf] %vm2413, %v2347
      %2605 = vst.msk [vmem:[%s216 + $0x2fc] sm:$0xf] %vm2413, %v2348
      %2606 = vst.msk [vmem:[%s216 + $0x300] sm:$0xf] %vm2413, %v2349
      %2607 = vst.msk [vmem:[%s216 + $0x304] sm:$0xf] %vm2413, %v2350
      %2608 = vst.msk [vmem:[%s216 + $0x308] sm:$0xf] %vm2413, %v2351
      %2609 = vst.msk [vmem:[%s216 + $0x30c] sm:$0xf] %vm2413, %v2352
      %2610 = vst.msk [vmem:[%s216 + $0x310] sm:$0xf] %vm2413, %v2353
      %2611 = vst.msk [vmem:[%s216 + $0x314] sm:$0xf] %vm2413, %v2354
      %2612 = vst.msk [vmem:[%s216 + $0x318] sm:$0xf] %vm2413, %v2355
      %2613 = vst.msk [vmem:[%s216 + $0x31c] sm:$0xf] %vm2413, %v2356
      %2614 = vst.msk [vmem:[%s216 + $0x320] sm:$0xf] %vm2413, %v2357
      %2615 = vst.msk [vmem:[%s216 + $0x324] sm:$0xf] %vm2413, %v2358
      %2616 = vst.msk [vmem:[%s216 + $0x328] sm:$0xf] %vm2413, %v2359
      %2617 = vst.msk [vmem:[%s216 + $0x32c] sm:$0xf] %vm2413, %v2360
      %2618 = vst.msk [vmem:[%s216 + $0x330] sm:$0xf] %vm2413, %v2361
      %2619 = vst.msk [vmem:[%s216 + $0x334] sm:$0xf] %vm2413, %v2362
      %2620 = vst.msk [vmem:[%s216 + $0x338] sm:$0xf] %vm2413, %v2363
      %2621 = vst.msk [vmem:[%s216 + $0x33c] sm:$0xf] %vm2413, %v2364
      %2622 = vst.msk [vmem:[%s216 + $0x340] sm:$0xf] %vm2413, %v2365
      %2623 = vst.msk [vmem:[%s216 + $0x344] sm:$0xf] %vm2413, %v2366
      %2624 = vst.msk [vmem:[%s216 + $0x348] sm:$0xf] %vm2413, %v2367
      %2625 = vst.msk [vmem:[%s216 + $0x34c] sm:$0xf] %vm2413, %v2368
      %2626 = vst.msk [vmem:[%s216 + $0x350] sm:$0xf] %vm2413, %v2369
      %2627 = vst.msk [vmem:[%s216 + $0x354] sm:$0xf] %vm2413, %v2370
      %2628 = vst.msk [vmem:[%s216 + $0x358] sm:$0xf] %vm2413, %v2371
      %2629 = vst.msk [vmem:[%s216 + $0x35c] sm:$0xf] %vm2413, %v2372
      %2630 = vst.msk [vmem:[%s216 + $0x360] sm:$0xf] %vm2413, %v2373
      %2631 = vst.msk [vmem:[%s216 + $0x364] sm:$0xf] %vm2413, %v2374
      %2632 = vst.msk [vmem:[%s216 + $0x368] sm:$0xf] %vm2413, %v2375
      %2633 = vst.msk [vmem:[%s216 + $0x36c] sm:$0xf] %vm2413, %v2376
      %2634 = vst.msk [vmem:[%s216 + $0x370] sm:$0xf] %vm2413, %v2377
      %2635 = vst.msk [vmem:[%s216 + $0x374] sm:$0xf] %vm2413, %v2378
      %2636 = vst.msk [vmem:[%s216 + $0x378] sm:$0xf] %vm2413, %v2379
      %2637 = vst.msk [vmem:[%s216 + $0x37c] sm:$0xf] %vm2413, %v2380
      %2638 = vst.msk [vmem:[%s216 + $0x380] sm:$0xf] %vm2413, %v2381
      %2639 = vst.msk [vmem:[%s216 + $0x384] sm:$0xf] %vm2413, %v2382
      %2640 = vst.msk [vmem:[%s216 + $0x388] sm:$0xf] %vm2413, %v2383
      %2641 = vst.msk [vmem:[%s216 + $0x38c] sm:$0xf] %vm2413, %v2384
      %2642 = vst.msk [vmem:[%s216 + $0x390] sm:$0xf] %vm2413, %v2385
      %2643 = vst.msk [vmem:[%s216 + $0x394] sm:$0xf] %vm2413, %v2386
      %2644 = vst.msk [vmem:[%s216 + $0x398] sm:$0xf] %vm2413, %v2387
      %2645 = vst.msk [vmem:[%s216 + $0x39c] sm:$0xf] %vm2413, %v2388
      %2646 = vst.msk [vmem:[%s216 + $0x3a0] sm:$0xf] %vm2413, %v2389
      %2647 = vst.msk [vmem:[%s216 + $0x3a4] sm:$0xf] %vm2413, %v2390
      %2648 = vst.msk [vmem:[%s216 + $0x3a8] sm:$0xf] %vm2413, %v2391
      %2649 = vst.msk [vmem:[%s216 + $0x3ac] sm:$0xf] %vm2413, %v2392
      %2650 = vst.msk [vmem:[%s216 + $0x3b0] sm:$0xf] %vm2413, %v2393
      %2651 = vst.msk [vmem:[%s216 + $0x3b4] sm:$0xf] %vm2413, %v2394
      %2652 = vst.msk [vmem:[%s216 + $0x3b8] sm:$0xf] %vm2413, %v2395
      %2653 = vst.msk [vmem:[%s216 + $0x3bc] sm:$0xf] %vm2413, %v2396
      %2654 = vst.msk [vmem:[%s216 + $0x3c0] sm:$0xf] %vm2413, %v2397
      %2655 = vst.msk [vmem:[%s216 + $0x3c4] sm:$0xf] %vm2413, %v2398
      %2656 = vst.msk [vmem:[%s216 + $0x3c8] sm:$0xf] %vm2413, %v2399
      %2657 = vst.msk [vmem:[%s216 + $0x3cc] sm:$0xf] %vm2413, %v2400
      %2658 = vst.msk [vmem:[%s216 + $0x3d0] sm:$0xf] %vm2413, %v2401
      %2659 = vst.msk [vmem:[%s216 + $0x3d4] sm:$0xf] %vm2413, %v2402
      %2660 = vst.msk [vmem:[%s216 + $0x3d8] sm:$0xf] %vm2413, %v2403
      %2661 = vst.msk [vmem:[%s216 + $0x3dc] sm:$0xf] %vm2413, %v2404
      %2662 = vst.msk [vmem:[%s216 + $0x3e0] sm:$0xf] %vm2413, %v2405
      %2663 = vst.msk [vmem:[%s216 + $0x3e4] sm:$0xf] %vm2413, %v2406
      %2664 = vst.msk [vmem:[%s216 + $0x3e8] sm:$0xf] %vm2413, %v2407
      %2665 = vst.msk [vmem:[%s216 + $0x3ec] sm:$0xf] %vm2413, %v2408
      %2666 = vst.msk [vmem:[%s216 + $0x3f0] sm:$0xf] %vm2413, %v2409
      %2667 = vst.msk [vmem:[%s216 + $0x3f4] sm:$0xf] %vm2413, %v2410
      %2668 = vst.msk [vmem:[%s216 + $0x3f8] sm:$0xf] %vm2413, %v2411
      %2669 = vst.msk [vmem:[%s216 + $0x3fc] sm:$0xf] %vm2413, %v2412
      %s2670 = smul.u32 256, %s18
      %p2671 = scmp.lt.s32.totalorder %s2670, 4095
      %s2672 = scalar_select %p2671, %s2670, 4095
      %p2673 = scmp.lt.s32.totalorder %s19, 0
      %s2674 = scalar_select %p2673, %s19, 0
      %s2675 = sadd.s32 %s2674, %s2672
      %s2676 = smul.addr %s2675, 4
      %s2677 = scalar_lea.vmem %s2, %s2676
      // Predicated region
      $region29: #{conv2d_down.1} parent=27 // pred_check
        %p2678 = pneg %p108
      $region30: #{conv2d_down.1} parent=27 // pred_check_branch
        %2680 = sbr.rel (%p2678) target = $region32
      $region31: #{conv2d_down.1} parent=27 // pred_region
        %s2681 = smul.u32 256, %s18
      $region32: #{conv2d_down.1} parent=27 // pred_fallthru
        _
    $region28: #{conv2d_down.1} parent=5 // pred_fallthru
      _
    %p2682 = scmp.le.s32.totalorder 2, %s8
    // Predicated region
    $region33: #{conv2d_down.1} parent=5 // pred_check
      %p2683 = pneg %p2682
    $region34: #{conv2d_down.1} parent=5 // pred_check_branch
      %2685 = sbr.rel (%p2683) target = $region36
    $region35: #{conv2d_down.1} parent=5 // pred_region
      %s2686 = ssub.s32 %s8, 2
      // Predicated region
      $region37: #{conv2d_down.1} parent=35 // pred_check
        %p2687 = pneg %p114
      $region38: #{conv2d_down.1} parent=35 // pred_check_branch
        %2689 = sbr.rel (%p2687) target = $region40
      $region39: #{conv2d_down.1} parent=35 // pred_region
        %s2690 = smul.u32 256, %s21
        %p2691 = scmp.lt.s32.totalorder %s2690, 4095
        %s2692 = scalar_select %p2691, %s2690, 4095
        %p2693 = scmp.lt.s32.totalorder %s22, 0
        %s2694 = scalar_select %p2693, %s22, 0
        %s2695 = sadd.s32 %s2694, %s2692
        %s2696 = smul.addr %s2695, 4
        %s2697 = scalar_lea.vmem %s2, %s2696
      $region40: #{conv2d_down.1} parent=35 // pred_fallthru
        _
    $region36: #{conv2d_down.1} parent=5 // pred_fallthru
      _
  $region6: #{conv2d_down.1} parent=0 // loop_footer
    %s12 = sadd.s32 1, %s8
  $region7: #{conv2d_down.1} parent=0 // loop_footer_branch
    %7 = sbr.rel target = $region3
  $region8: #{conv2d_down.1} parent=0 // loop_exit
    _

</llo_original>
